<compile_context>
chip_gen: v7x
topology: tpu7x:2x2x1
jax: 0.10.0
libtpu: 0.0.40
codegen_flags: <defaults>
</compile_context>

<pallas_src>
import jax
import jax.numpy as jnp
from jax.experimental import pallas as pl
from jax.experimental.pallas import tpu as pltpu


# ------------------------- model dimensions (from the PyTorch module) --------
INPUT_DIM = 77
HID1 = [512] * 4           # SimpleMLP 1 hidden dims
OUT1 = 9
HID2 = [512] * 5           # SimpleMLP 2 hidden dims
OUT2 = 1
HID = 512
LANE = 128


def _round_up(n, m):
    return (n + m - 1) // m * m


PAD_IN = _round_up(INPUT_DIM, LANE)    # 77 -> 128
PAD_OUT = LANE                         # 9 -> 128 and 1 -> 128

# Streamed 512x512 layers, in execution order:
#   [MLP1 L1, MLP1 L2, MLP1 L3, MLP2 L0 (h-part), MLP2 L1, MLP2 L2, MLP2 L3, MLP2 L4]
N_STREAM = 8


# -----------------------------------------------------------------------------
# Kernel: grid=(N_STREAM,) over the streamed weight slabs; activation carried in
# a persistent VMEM scratch.  Step l consumes wh[l]; special steps:
#   l==0 : prologue computes MLP1 layer0 (x @ wx[0]) and the MLP2-layer0 x-part.
#   l==3 : MLP1 output head is emitted from the incoming hidden, and the
#          precomputed x-part is added (this is the folded concat).
#   l==7 : MLP2 output head is emitted from the freshly computed hidden.
# -----------------------------------------------------------------------------
def _fused_model_kernel(x_ref, wx_ref, wh_ref, wout_ref, b_ref,
                        out1_ref, out2_ref, act_sc, xc_sc):
    l = pl.program_id(0)
    x = x_ref[...]                                            # (B, 128) bf16

    @pl.when(l == 0)
    def _():
        # MLP1 layer 0: relu(x @ W0 + b0)
        y0 = jnp.dot(x, wx_ref[0], preferred_element_type=jnp.float32)
        y0 = y0 + b_ref[pl.ds(0, 1), :]
        act_sc[...] = jnp.maximum(y0, 0.0).astype(jnp.bfloat16)
        # Precompute MLP2 layer-0 x-part: x @ W2_0[:77]  (added at step 3)
        xc_sc[...] = jnp.dot(x, wx_ref[1], preferred_element_type=jnp.float32)

    h = act_sc[...]                                           # (B, 512) bf16

    # MLP1 output head uses MLP1's last hidden (available entering step 3).
    @pl.when(l == 3)
    def _():
        out1_ref[...] = (jnp.dot(h, wout_ref[0], preferred_element_type=jnp.float32)
                         + b_ref[pl.ds(9, 1), :PAD_OUT])

    # Main streamed layer: relu(h @ W + b [+ x-part at step 3])
    y = jnp.dot(h, wh_ref[0], preferred_element_type=jnp.float32)
    y = y + b_ref[pl.ds(l + 1, 1), :]
    y = y + xc_sc[...] * (l == 3).astype(jnp.float32)         # folded concat
    g = jnp.maximum(y, 0.0)
    act_sc[...] = g.astype(jnp.bfloat16)

    # MLP2 output head after the last streamed layer.
    @pl.when(l == N_STREAM - 1)
    def _():
        out2_ref[...] = (jnp.dot(g.astype(jnp.bfloat16), wout_ref[1],
                                 preferred_element_type=jnp.float32)
                         + b_ref[pl.ds(10, 1), :PAD_OUT])


def model_forward(x, kparams):
    """x: (B, 77) f32.  Returns (pred (B, 1), pred_all (B, 9))."""
    wx, wh, wout, b_all = kparams
    B = x.shape[0]
    Bp = max(8, _round_up(B, 8))
    x_pad = (jnp.zeros((Bp, PAD_IN), jnp.bfloat16)
             .at[:B, :INPUT_DIM].set(x.astype(jnp.bfloat16)))

    out1_pad, out2_pad = pl.pallas_call(
        _fused_model_kernel,
        grid=(N_STREAM,),
        in_specs=[
            pl.BlockSpec((Bp, PAD_IN), lambda l: (0, 0)),          # x (resident)
            pl.BlockSpec((2, PAD_IN, HID), lambda l: (0, 0, 0)),   # wx (resident)
            pl.BlockSpec((1, HID, HID), lambda l: (l, 0, 0)),      # wh (streamed)
            pl.BlockSpec((2, HID, PAD_OUT), lambda l: (0, 0, 0)),  # wout (resident)
            pl.BlockSpec((11, HID), lambda l: (0, 0)),             # biases (resident)
        ],
        out_specs=(
            pl.BlockSpec((Bp, PAD_OUT), lambda l: (0, 0)),
            pl.BlockSpec((Bp, PAD_OUT), lambda l: (0, 0)),
        ),
        out_shape=(
            jax.ShapeDtypeStruct((Bp, PAD_OUT), jnp.float32),      # out1 (pred_all)
            jax.ShapeDtypeStruct((Bp, PAD_OUT), jnp.float32),      # out2 (pred)
        ),
        scratch_shapes=[
            pltpu.VMEM((Bp, HID), jnp.bfloat16),                   # activation carry
            pltpu.VMEM((Bp, HID), jnp.float32),                    # x-part of MLP2 L0
        ],
        compiler_params=pltpu.CompilerParams(
            dimension_semantics=("arbitrary",),
            vmem_limit_bytes=12 * 1024 * 1024,
        ),
    )(x_pad, wx, wh, wout, b_all)

    pred = out2_pad[:B, :OUT2]
    pred_all = out1_pad[:B, :OUT1]
    return pred, pred_all


# -----------------------------------------------------------------------------
# Parameter init & packing
# -----------------------------------------------------------------------------
def init_simplemlp(key, input_dim, hidden_dims, output_dim):
    """PyTorch-style uniform(-1/sqrt(fan_in), +1/sqrt(fan_in)) init, f32.
    NOTE: the module uses zeroinit=True for hidden-layer weights; we use a small
    random init instead so outputs are non-degenerate for verification."""
    dims = [input_dim] + list(hidden_dims) + [output_dim]
    weights, biases = [], []
    for i in range(len(dims) - 1):
        key, kw, kb = jax.random.split(key, 3)
        bound = 1.0 / (dims[i] ** 0.5)
        weights.append(jax.random.uniform(kw, (dims[i], dims[i + 1]),
                                          jnp.float32, -bound, bound))
        biases.append(jax.random.uniform(kb, (dims[i + 1],),
                                         jnp.float32, -bound, bound))
    return (weights, biases), key


def prepare_kernel_params(params1, params2):
    """Pack all weights/biases into 4 arrays (see header) and cast weights bf16."""
    (w1, b1), (w2, b2) = params1, params2

    # x-consuming partial weights (rows padded 77 -> 128).
    wx = jnp.zeros((2, PAD_IN, HID), jnp.float32)
    wx = wx.at[0, :INPUT_DIM, :].set(w1[0])
    wx = wx.at[1, :INPUT_DIM, :].set(w2[0][:INPUT_DIM, :])
    wx = wx.astype(jnp.bfloat16)

    # Streamed 512x512 hidden layers, execution order.
    wh = jnp.stack([w1[1], w1[2], w1[3],
                    w2[0][INPUT_DIM:, :],
                    w2[1], w2[2], w2[3], w2[4]]).astype(jnp.bfloat16)

    # Output heads (cols padded to 128).
    wout = jnp.zeros((2, HID, PAD_OUT), jnp.float32)
    wout = wout.at[0, :, :OUT1].set(w1[4])
    wout = wout.at[1, :, :OUT2].set(w2[5])
    wout = wout.astype(jnp.bfloat16)

    # Biases: row 0 = MLP1 L0; rows 1..8 = streamed layers; row 9 = out1; row 10 = out2.
    b_all = jnp.zeros((11, HID), jnp.float32)
    b_all = b_all.at[0, :].set(b1[0])
    for i, b in enumerate([b1[1], b1[2], b1[3], b2[0], b2[1], b2[2], b2[3], b2[4]]):
        b_all = b_all.at[i + 1, :].set(b)
    b_all = b_all.at[9, :OUT1].set(b1[4])
    b_all = b_all.at[10, :OUT2].set(b2[5])

    return wx, wh, wout, b_all


# -----------------------------------------------------------------------------
# Pure-JAX references
# -----------------------------------------------------------------------------
def reference_forward_f32(x, params1, params2):
    def mlp(x, ws, bs):
        h = x
        for W, b in zip(ws[:-1], bs[:-1]):
            h = jnp.maximum(h @ W + b, 0.0)
        return h @ ws[-1] + bs[-1], h

    pred_all, hidden = mlp(x, *params1)
    pred, _ = mlp(jnp.concatenate([x, hidden], axis=-1), *params2)
    return pred, pred_all


def reference_forward_bf16(x, kparams):
    """Numerics-matched reference: same bf16 weights, bf16 activation storage and
    f32 accumulation as the Pallas kernel, in plain jnp."""
    wx, wh, wout, b_all = kparams
    B = x.shape[0]
    xb = (jnp.zeros((B, PAD_IN), jnp.bfloat16)
          .at[:, :INPUT_DIM].set(x.astype(jnp.bfloat16)))

    def mm(a, w):
        return jnp.dot(a, w, preferred_element_type=jnp.float32)

    h = jnp.maximum(mm(xb, wx[0]) + b_all[0], 0.0).astype(jnp.bfloat16)
    xc = mm(xb, wx[1])
    out1 = None
    for l in range(N_STREAM):
        if l == 3:
            out1 = mm(h, wout[0]) + b_all[9, :PAD_OUT]
        y = mm(h, wh[l]) + b_all[l + 1]
        if l == 3:
            y = y + xc
        h = jnp.maximum(y, 0.0).astype(jnp.bfloat16)
    out2 = mm(h, wout[1]) + b_all[10, :PAD_OUT]
    return out2[:, :OUT2], out1[:, :OUT1]


if __name__ == "__main__":
    key = jax.random.PRNGKey(0)
    BATCH = 8

    params1, key = init_simplemlp(key, INPUT_DIM, HID1, OUT1)
    params2, key = init_simplemlp(key, INPUT_DIM + HID1[-1], HID2, OUT2)
    kparams = prepare_kernel_params(params1, params2)

    key, kx = jax.random.split(key)
    x = jax.random.normal(kx, (BATCH, INPUT_DIM), jnp.float32)

    fwd = jax.jit(model_forward)
    pred, pred_all = fwd(x, kparams)
    jax.block_until_ready((pred, pred_all))

    assert pred.shape == (BATCH, OUT2) and pred_all.shape == (BATCH, OUT1)

    # Strict check vs a numerics-matched (bf16-weight) pure-JAX reference.
    rp, rpa = reference_forward_bf16(x, kparams)
    assert jnp.allclose(pred, rp, atol=5e-3, rtol=5e-3), \
        float(jnp.max(jnp.abs(pred - rp)))
    assert jnp.allclose(pred_all, rpa, atol=5e-3, rtol=5e-3), \
        float(jnp.max(jnp.abs(pred_all - rpa)))

    # Loose check vs the full-f32 reference (bf16 weight quantization error).
    fp, fpa = reference_forward_f32(x, params1, params2)
    assert jnp.allclose(pred, fp, atol=5e-2, rtol=5e-2)
    assert jnp.allclose(pred_all, fpa, atol=5e-2, rtol=5e-2)

    print("KERNEL_OK")
</pallas_src>

<mosaic_0001>
module attributes {stable_mosaic.version = 11 : i64} {
  func.func @_fused_model_kernel(%arg0: i32, %arg1: memref<8x128xbf16, #tpu.memory_space<vmem>>, %arg2: memref<2x128x512xbf16, #tpu.memory_space<vmem>>, %arg3: memref<1x512x512xbf16, #tpu.memory_space<vmem>>, %arg4: memref<2x512x128xbf16, #tpu.memory_space<vmem>>, %arg5: memref<11x512xf32, #tpu.memory_space<vmem>>, %arg6: memref<8x128xf32, #tpu.memory_space<vmem>>, %arg7: memref<8x128xf32, #tpu.memory_space<vmem>>, %arg8: memref<8x512xbf16, #tpu.memory_space<vmem>>, %arg9: memref<8x512xf32, #tpu.memory_space<vmem>>) attributes {dimension_semantics = [#tpu.dimension_semantics<arbitrary>], iteration_bounds = array<i64: 8>, scalar_prefetch = 0 : i64, scratch_operands = 2 : i64, tpu.core_type = #tpu.core_type<tc>, window_params = [{pipeline_mode = #tpu.pipeline_mode<synchronous>, transform_indices = @transform_0, window_bounds = array<i64: 8, 128>}, {pipeline_mode = #tpu.pipeline_mode<synchronous>, transform_indices = @transform_1, window_bounds = array<i64: 2, 128, 512>}, {transform_indices = @transform_2, window_bounds = array<i64: 1, 512, 512>}, {pipeline_mode = #tpu.pipeline_mode<synchronous>, transform_indices = @transform_3, window_bounds = array<i64: 2, 512, 128>}, {pipeline_mode = #tpu.pipeline_mode<synchronous>, transform_indices = @transform_4, window_bounds = array<i64: 11, 512>}, {pipeline_mode = #tpu.pipeline_mode<synchronous>, transform_indices = @transform_5, window_bounds = array<i64: 8, 128>}, {pipeline_mode = #tpu.pipeline_mode<synchronous>, transform_indices = @transform_6, window_bounds = array<i64: 8, 128>}]} {
    %c0 = arith.constant 0 : index
    %c0_0 = arith.constant 0 : index
    %0 = vector.load %arg1[%c0, %c0_0] : memref<8x128xbf16, #tpu.memory_space<vmem>>, vector<8x128xbf16>
    %c0_i32 = arith.constant 0 : i32
    %1 = arith.cmpi eq, %arg0, %c0_i32 : i32
    %2 = arith.extui %1 : i1 to i32
    %c0_i32_1 = arith.constant 0 : i32
    %3 = arith.cmpi ne, %2, %c0_i32_1 : i32
    scf.if %3 {
      %c0_16 = arith.constant 0 : index
      %c0_17 = arith.constant 0 : index
      %c0_18 = arith.constant 0 : index
      %30 = vector.load %arg2[%c0_16, %c0_17, %c0_18] : memref<2x128x512xbf16, #tpu.memory_space<vmem>>, vector<1x128x512xbf16>
      %31 = vector.shape_cast %30 : vector<1x128x512xbf16> to vector<128x512xbf16>
      %cst_19 = arith.constant dense<0.000000e+00> : vector<8x512xf32>
      %32 = tpu.matmul %0, %31, %cst_19 {dimension_numbers = #tpu.dot_dimension_numbers<[1], [0], [0], [1], [0, 0, 1, 1], [], []>} : vector<8x128xbf16>, vector<128x512xbf16>, vector<8x512xf32> -> vector<8x512xf32>
      %c0_20 = arith.constant 0 : index
      %c0_21 = arith.constant 0 : index
      %33 = vector.load %arg5[%c0_20, %c0_21] : memref<11x512xf32, #tpu.memory_space<vmem>>, vector<1x512xf32>
      %34 = vector.broadcast %33 : vector<1x512xf32> to vector<8x512xf32>
      %35 = arith.addf %32, %34 : vector<8x512xf32>
      %cst_22 = arith.constant 0.000000e+00 : f32
      %36 = vector.broadcast %cst_22 : f32 to vector<8x512xf32>
      %37 = arith.maximumf %35, %36 : vector<8x512xf32>
      %38 = arith.truncf %37 : vector<8x512xf32> to vector<8x512xbf16>
      %c0_23 = arith.constant 0 : index
      %c0_24 = arith.constant 0 : index
      %39 = vector.load %arg8[%c0_23, %c0_24] : memref<8x512xbf16, #tpu.memory_space<vmem>>, vector<8x512xbf16>
      tpu.vector_store %arg8[%c0_23, %c0_24], %38 {strides = array<i32>} : memref<8x512xbf16, #tpu.memory_space<vmem>>, vector<8x512xbf16>,
      %c1 = arith.constant 1 : index
      %c0_25 = arith.constant 0 : index
      %c0_26 = arith.constant 0 : index
      %40 = vector.load %arg2[%c1, %c0_25, %c0_26] : memref<2x128x512xbf16, #tpu.memory_space<vmem>>, vector<1x128x512xbf16>
      %41 = vector.shape_cast %40 : vector<1x128x512xbf16> to vector<128x512xbf16>
      %cst_27 = arith.constant dense<0.000000e+00> : vector<8x512xf32>
      %42 = tpu.matmul %0, %41, %cst_27 {dimension_numbers = #tpu.dot_dimension_numbers<[1], [0], [0], [1], [0, 0, 1, 1], [], []>} : vector<8x128xbf16>, vector<128x512xbf16>, vector<8x512xf32> -> vector<8x512xf32>
      %c0_28 = arith.constant 0 : index
      %c0_29 = arith.constant 0 : index
      %43 = vector.load %arg9[%c0_28, %c0_29] : memref<8x512xf32, #tpu.memory_space<vmem>>, vector<8x512xf32>
      tpu.vector_store %arg9[%c0_28, %c0_29], %42 {strides = array<i32>} : memref<8x512xf32, #tpu.memory_space<vmem>>, vector<8x512xf32>,
    } else {
    }
    %c0_2 = arith.constant 0 : index
    %c0_3 = arith.constant 0 : index
    %4 = vector.load %arg8[%c0_2, %c0_3] : memref<8x512xbf16, #tpu.memory_space<vmem>>, vector<8x512xbf16>
    %c3_i32 = arith.constant 3 : i32
    %5 = arith.cmpi eq, %arg0, %c3_i32 : i32
    %6 = arith.extui %5 : i1 to i32
    %c0_i32_4 = arith.constant 0 : i32
    %7 = arith.cmpi ne, %6, %c0_i32_4 : i32
    scf.if %7 {
      %c0_16 = arith.constant 0 : index
      %c0_17 = arith.constant 0 : index
      %c0_18 = arith.constant 0 : index
      %30 = vector.load %arg4[%c0_16, %c0_17, %c0_18] : memref<2x512x128xbf16, #tpu.memory_space<vmem>>, vector<1x512x128xbf16>
      %31 = vector.shape_cast %30 : vector<1x512x128xbf16> to vector<512x128xbf16>
      %cst_19 = arith.constant dense<0.000000e+00> : vector<8x128xf32>
      %32 = tpu.matmul %4, %31, %cst_19 {dimension_numbers = #tpu.dot_dimension_numbers<[1], [0], [0], [1], [0, 0, 1, 1], [], []>} : vector<8x512xbf16>, vector<512x128xbf16>, vector<8x128xf32> -> vector<8x128xf32>
      %c9 = arith.constant 9 : index
      %c0_20 = arith.constant 0 : index
      %33 = vector.load %arg5[%c9, %c0_20] : memref<11x512xf32, #tpu.memory_space<vmem>>, vector<1x128xf32>
      %34 = vector.broadcast %33 : vector<1x128xf32> to vector<8x128xf32>
      %35 = arith.addf %32, %34 : vector<8x128xf32>
      %c0_21 = arith.constant 0 : index
      %c0_22 = arith.constant 0 : index
      %36 = vector.load %arg6[%c0_21, %c0_22] : memref<8x128xf32, #tpu.memory_space<vmem>>, vector<8x128xf32>
      tpu.vector_store %arg6[%c0_21, %c0_22], %35 {strides = array<i32>} : memref<8x128xf32, #tpu.memory_space<vmem>>, vector<8x128xf32>,
    } else {
    }
    %c0_5 = arith.constant 0 : index
    %c0_6 = arith.constant 0 : index
    %c0_7 = arith.constant 0 : index
    %8 = vector.load %arg3[%c0_5, %c0_6, %c0_7] : memref<1x512x512xbf16, #tpu.memory_space<vmem>>, vector<1x512x512xbf16>
    %9 = vector.shape_cast %8 : vector<1x512x512xbf16> to vector<512x512xbf16>
    %cst = arith.constant dense<0.000000e+00> : vector<8x512xf32>
    %10 = tpu.matmul %4, %9, %cst {dimension_numbers = #tpu.dot_dimension_numbers<[1], [0], [0], [1], [0, 0, 1, 1], [], []>} : vector<8x512xbf16>, vector<512x512xbf16>, vector<8x512xf32> -> vector<8x512xf32>
    %c1_i32 = arith.constant 1 : i32
    %11 = arith.addi %arg0, %c1_i32 : i32
    %12 = arith.index_cast %11 : i32 to index
    %c0_8 = arith.constant 0 : index
    %13 = vector.load %arg5[%12, %c0_8] : memref<11x512xf32, #tpu.memory_space<vmem>>, vector<1x512xf32>
    %14 = vector.broadcast %13 : vector<1x512xf32> to vector<8x512xf32>
    %15 = arith.addf %10, %14 : vector<8x512xf32>
    %c0_9 = arith.constant 0 : index
    %c0_10 = arith.constant 0 : index
    %16 = vector.load %arg9[%c0_9, %c0_10] : memref<8x512xf32, #tpu.memory_space<vmem>>, vector<8x512xf32>
    %c3_i32_11 = arith.constant 3 : i32
    %17 = arith.cmpi eq, %arg0, %c3_i32_11 : i32
    %18 = arith.extui %17 : i1 to i32
    %19 = arith.sitofp %18 : i32 to f32
    %20 = vector.broadcast %19 : f32 to vector<8x512xf32>
    %21 = arith.mulf %16, %20 : vector<8x512xf32>
    %22 = arith.addf %15, %21 : vector<8x512xf32>
    %cst_12 = arith.constant 0.000000e+00 : f32
    %23 = vector.broadcast %cst_12 : f32 to vector<8x512xf32>
    %24 = arith.maximumf %22, %23 : vector<8x512xf32>
    %25 = arith.truncf %24 : vector<8x512xf32> to vector<8x512xbf16>
    %c0_13 = arith.constant 0 : index
    %c0_14 = arith.constant 0 : index
    %26 = vector.load %arg8[%c0_13, %c0_14] : memref<8x512xbf16, #tpu.memory_space<vmem>>, vector<8x512xbf16>
    tpu.vector_store %arg8[%c0_13, %c0_14], %25 {strides = array<i32>} : memref<8x512xbf16, #tpu.memory_space<vmem>>, vector<8x512xbf16>,
    %c7_i32 = arith.constant 7 : i32
    %27 = arith.cmpi eq, %arg0, %c7_i32 : i32
    %28 = arith.extui %27 : i1 to i32
    %c0_i32_15 = arith.constant 0 : i32
    %29 = arith.cmpi ne, %28, %c0_i32_15 : i32
    scf.if %29 {
      %30 = arith.truncf %24 : vector<8x512xf32> to vector<8x512xbf16>
      %c1 = arith.constant 1 : index
      %c0_16 = arith.constant 0 : index
      %c0_17 = arith.constant 0 : index
      %31 = vector.load %arg4[%c1, %c0_16, %c0_17] : memref<2x512x128xbf16, #tpu.memory_space<vmem>>, vector<1x512x128xbf16>
      %32 = vector.shape_cast %31 : vector<1x512x128xbf16> to vector<512x128xbf16>
      %cst_18 = arith.constant dense<0.000000e+00> : vector<8x128xf32>
      %33 = tpu.matmul %30, %32, %cst_18 {dimension_numbers = #tpu.dot_dimension_numbers<[1], [0], [0], [1], [0, 0, 1, 1], [], []>} : vector<8x512xbf16>, vector<512x128xbf16>, vector<8x128xf32> -> vector<8x128xf32>
      %c10 = arith.constant 10 : index
      %c0_19 = arith.constant 0 : index
      %34 = vector.load %arg5[%c10, %c0_19] : memref<11x512xf32, #tpu.memory_space<vmem>>, vector<1x128xf32>
      %35 = vector.broadcast %34 : vector<1x128xf32> to vector<8x128xf32>
      %36 = arith.addf %33, %35 : vector<8x128xf32>
      %c0_20 = arith.constant 0 : index
      %c0_21 = arith.constant 0 : index
      %37 = vector.load %arg7[%c0_20, %c0_21] : memref<8x128xf32, #tpu.memory_space<vmem>>, vector<8x128xf32>
      tpu.vector_store %arg7[%c0_20, %c0_21], %36 {strides = array<i32>} : memref<8x128xf32, #tpu.memory_space<vmem>>, vector<8x128xf32>,
    } else {
    }
    return
  }
  func.func @transform_0(%arg0: i32) -> (i32, i32) {
    %c0_i32 = arith.constant 0 : i32
    %c0_i32_0 = arith.constant 0 : i32
    %c0_i32_1 = arith.constant 0 : i32
    return %c0_i32, %c0_i32_0 : i32, i32
  }
  func.func @transform_1(%arg0: i32) -> (i32, i32, i32) {
    %c0_i32 = arith.constant 0 : i32
    %c0_i32_0 = arith.constant 0 : i32
    %c0_i32_1 = arith.constant 0 : i32
    %c0_i32_2 = arith.constant 0 : i32
    return %c0_i32, %c0_i32_0, %c0_i32_1 : i32, i32, i32
  }
  func.func @transform_2(%arg0: i32) -> (i32, i32, i32) {
    %c0_i32 = arith.constant 0 : i32
    %c0_i32_0 = arith.constant 0 : i32
    %c0_i32_1 = arith.constant 0 : i32
    return %arg0, %c0_i32, %c0_i32_0 : i32, i32, i32
  }
  func.func @transform_3(%arg0: i32) -> (i32, i32, i32) {
    %c0_i32 = arith.constant 0 : i32
    %c0_i32_0 = arith.constant 0 : i32
    %c0_i32_1 = arith.constant 0 : i32
    %c0_i32_2 = arith.constant 0 : i32
    return %c0_i32, %c0_i32_0, %c0_i32_1 : i32, i32, i32
  }
  func.func @transform_4(%arg0: i32) -> (i32, i32) {
    %c0_i32 = arith.constant 0 : i32
    %c0_i32_0 = arith.constant 0 : i32
    %c0_i32_1 = arith.constant 0 : i32
    return %c0_i32, %c0_i32_0 : i32, i32
  }
  func.func @transform_5(%arg0: i32) -> (i32, i32) {
    %c0_i32 = arith.constant 0 : i32
    %c0_i32_0 = arith.constant 0 : i32
    %c0_i32_1 = arith.constant 0 : i32
    return %c0_i32, %c0_i32_0 : i32, i32
  }
  func.func @transform_6(%arg0: i32) -> (i32, i32) {
    %c0_i32 = arith.constant 0 : i32
    %c0_i32_0 = arith.constant 0 : i32
    %c0_i32_1 = arith.constant 0 : i32
    return %c0_i32, %c0_i32_0 : i32, i32
  }
}

</mosaic_0001>

<llo_original>
// kernel: model_forward.1
$region0: #{model_forward.1}
  #allocation0 [shape = 'u32[]', space=smem, size = 0x4, offset = 0x4, fixed_abs, tag = 'smem constant byte address 0x4 - core index']
  #allocation1 [shape = 'u32[144,128]{1,0:T(1,128)}', space=vmem, size = 0x12000, scoped, tag = 'internal scratch']
  #allocation2 [shape = 'bf16[8,512]{1,0:T(8,128)(2,1)}', space=vmem, size = 0x2000, scoped, tag = 'scratch operand']
  #allocation3 [shape = 'f32[8,512]{1,0:T(8,128)}', space=vmem, size = 0x4000, scoped, tag = 'scratch operand']
  %s0 = inlined_call_operand.vmem [shape: bf16[8,128], index: 0, kind: input, shape index: {}]
  %s1 = inlined_call_operand.hbm [shape: bf16[2,128,512], index: 1, kind: input, shape index: {}]
  %s2 = inlined_call_operand.hbm [shape: bf16[8,512,512], index: 2, kind: input, shape index: {}]
  %s3 = inlined_call_operand.hbm [shape: bf16[2,512,128], index: 3, kind: input, shape index: {}]
  %s4 = inlined_call_operand.hbm [shape: f32[11,512], index: 4, kind: input, shape index: {}]
  %s5 = inlined_call_operand.hbm [shape: f32[8,128], index: 5, kind: output, shape index: {0}]
  %s6 = inlined_call_operand.vmem [shape: f32[8,128], index: 6, kind: output, shape index: {1}]
  %7 = xla_tuple %s5, %s6
  %s8 = sld [smem:[#allocation0]]
  $region89: #{model_forward.1} parent=0
    _
  %s10 = ssub.s32 1, %s8
  %s11 = scalar_select 0, %s10, %s8
  $region1: #{model_forward.1} parent=0
    #allocation4 [shape = 'u8[262144]{0}', space=vmem, size = 0x40000, scoped, tag = 'input window, operand 1, single buffered']
    #allocation5 [shape = 's32[2]{0}', space=sflag, size = 0x8, scoped, tag = 'scoped memory for model_forward.1']
    #allocation6 [shape = 's32[2]{0}', space=sflag, size = 0x8, scoped, tag = 'scoped memory for model_forward.1']
    #allocation7 [shape = 'u8[1048576]{0}', space=vmem, size = 0x100000, scoped, tag = 'input window, operand 2']
    #allocation8 [shape = 's32[2]{0}', space=sflag, size = 0x8, scoped, tag = 'scoped memory for model_forward.1']
    #allocation9 [shape = 'u8[262144]{0}', space=vmem, size = 0x40000, scoped, tag = 'input window, operand 3, single buffered']
    #allocation10 [shape = 'u8[32768]{0}', space=vmem, size = 0x8000, scoped, tag = 'input window, operand 4, single buffered']
    #allocation11 [shape = 's32[1]{0}', space=sflag, size = 0x4, scoped, tag = 'scoped memory for model_forward.1']
    #allocation12 [shape = 'u8[4096]{0}', space=vmem, size = 0x1000, scoped, tag = 'output window, operand 0, single buffered']
    %12 = vsyncpa [#allocation5], 0
    %13 = vsyncpa [#allocation8], 0
    %s14 = scalar_lea.sflag [#allocation8], 1
    %15 = vsyncpa %s14, 0
    %16 = vsyncpa [#allocation11], 0
    %17 = vsyncpa [#allocation6], 0
    loop: start=0, step=1, limit=10
    $region2: #{model_forward.1} parent=1 // loop_pre_header
      _
    $region3: #{model_forward.1} parent=1 // loop_header
      %s19 = sphi 0, %s23
      %p20 = scmp.ge.s32.totalorder %s19, 10
      %s27 = sphi 0, %s27
      %s29 = sphi 0, %s27
      %s30 = sphi 0, %s29
      %s44 = sphi 0, %s30
      %s48 = sphi 0, %s48
      %s50 = sphi 0, %s48
      %s51 = sphi 0, %s50
      %s65 = sphi 0, %s51
      %s71 = sphi 0, %s73
      %s74 = sphi 0, %s71
      %s75 = sphi 0, %s74
      %s91 = sphi 0, %s75
      %s95 = sphi 0, %s95
      %s97 = sphi 0, %s95
      %s98 = sphi 0, %s97
      %s112 = sphi 0, %s98
      %s116 = sphi 0, %s116
      %s118 = sphi 0, %s116
      %s119 = sphi 0, %s118
      %s133 = sphi 0, %s119
      %s137 = sphi 0, %s137
      %s139 = sphi 0, %s137
      %s140 = sphi 0, %s139
      %s154 = sphi 0, %s140
      %s158 = sphi 0, %s158
      %s160 = sphi 0, %s158
      %s161 = sphi 0, %s160
      %s175 = sphi 0, %s161
    $region4: #{model_forward.1} parent=1 // loop_header_branch
      %22 = sbr.rel (%p20) target = $region8
    $region5: #{model_forward.1} parent=1 // loop_body
      %s24 = ssub.s32 %s19, 1
      %s25 = ssub.s32 %s19, 2
      %s26 = sadd.s32 %s19, 1
      %s28 = sadd.s32 %s27, 1
      %p31 = scmp.eq.s32.totalorder %s19, 7
      %p32 = scmp.ne.s32.totalorder %s27, %s29
      %p33 = scmp.eq.s32.totalorder %s19, 0
      %p34 = por %p32, %p33
      %p35 = scmp.ne.s32.totalorder %s27, %s29
      %p36 = scmp.eq.s32.totalorder %s24, 7
      %p37 = por %p35, %p36
      %p38 = scmp.ne.s32.totalorder %s29, %s30
      %p39 = scmp.eq.s32.totalorder %s24, 0
      %p40 = por %p38, %p39
      %p41 = scmp.ne.s32.totalorder %s29, %s30
      %p42 = scmp.eq.s32.totalorder %s25, 7
      %p43 = por %p41, %p42
      %p45 = scmp.ne.s32.totalorder %s30, %s44
      %p46 = scmp.eq.s32.totalorder %s25, 0
      %p47 = por %p45, %p46
      %s49 = sadd.s32 %s48, 1
      %p52 = scmp.eq.s32.totalorder %s19, 7
      %p53 = scmp.ne.s32.totalorder %s48, %s50
      %p54 = scmp.eq.s32.totalorder %s19, 0
      %p55 = por %p53, %p54
      %p56 = scmp.ne.s32.totalorder %s48, %s50
      %p57 = scmp.eq.s32.totalorder %s24, 7
      %p58 = por %p56, %p57
      %p59 = scmp.ne.s32.totalorder %s50, %s51
      %p60 = scmp.eq.s32.totalorder %s24, 0
      %p61 = por %p59, %p60
      %p62 = scmp.ne.s32.totalorder %s50, %s51
      %p63 = scmp.eq.s32.totalorder %s25, 7
      %p64 = por %p62, %p63
      %p66 = scmp.ne.s32.totalorder %s51, %s65
      %p67 = scmp.eq.s32.totalorder %s25, 0
      %p68 = por %p66, %p67
      %s69 = ssub.s32 %s19, %s26
      %p70 = scmp.eq.s32.totalorder %s69, 0
      %s72 = sadd.s32 %s71, 1
      %s73 = scalar_select %p70, %s71, %s72
      %p76 = pneg %p70
      %p77 = scmp.eq.s32.totalorder %s19, 7
      %p78 = por %p76, %p77
      %p79 = scmp.ne.s32.totalorder %s71, %s74
      %p80 = scmp.eq.s32.totalorder %s19, 0
      %p81 = por %p79, %p80
      %p82 = scmp.ne.s32.totalorder %s71, %s74
      %p83 = scmp.eq.s32.totalorder %s24, 7
      %p84 = por %p82, %p83
      %p85 = scmp.ne.s32.totalorder %s74, %s75
      %p86 = scmp.eq.s32.totalorder %s24, 0
      %p87 = por %p85, %p86
      %p88 = scmp.ne.s32.totalorder %s74, %s75
      %p89 = scmp.eq.s32.totalorder %s25, 7
      %p90 = por %p88, %p89
      %p92 = scmp.ne.s32.totalorder %s75, %s91
      %p93 = scmp.eq.s32.totalorder %s25, 0
      %p94 = por %p92, %p93
      %s96 = sadd.s32 %s95, 1
      %p99 = scmp.eq.s32.totalorder %s19, 7
      %p100 = scmp.ne.s32.totalorder %s95, %s97
      %p101 = scmp.eq.s32.totalorder %s19, 0
      %p102 = por %p100, %p101
      %p103 = scmp.ne.s32.totalorder %s95, %s97
      %p104 = scmp.eq.s32.totalorder %s24, 7
      %p105 = por %p103, %p104
      %p106 = scmp.ne.s32.totalorder %s97, %s98
      %p107 = scmp.eq.s32.totalorder %s24, 0
      %p108 = por %p106, %p107
      %p109 = scmp.ne.s32.totalorder %s97, %s98
      %p110 = scmp.eq.s32.totalorder %s25, 7
      %p111 = por %p109, %p110
      %p113 = scmp.ne.s32.totalorder %s98, %s112
      %p114 = scmp.eq.s32.totalorder %s25, 0
      %p115 = por %p113, %p114
      %s117 = sadd.s32 %s116, 1
      %p120 = scmp.eq.s32.totalorder %s19, 7
      %p121 = scmp.ne.s32.totalorder %s116, %s118
      %p122 = scmp.eq.s32.totalorder %s19, 0
      %p123 = por %p121, %p122
      %p124 = scmp.ne.s32.totalorder %s116, %s118
      %p125 = scmp.eq.s32.totalorder %s24, 7
      %p126 = por %p124, %p125
      %p127 = scmp.ne.s32.totalorder %s118, %s119
      %p128 = scmp.eq.s32.totalorder %s24, 0
      %p129 = por %p127, %p128
      %p130 = scmp.ne.s32.totalorder %s118, %s119
      %p131 = scmp.eq.s32.totalorder %s25, 7
      %p132 = por %p130, %p131
      %p134 = scmp.ne.s32.totalorder %s119, %s133
      %p135 = scmp.eq.s32.totalorder %s25, 0
      %p136 = por %p134, %p135
      %s138 = sadd.s32 %s137, 1
      %p141 = scmp.eq.s32.totalorder %s19, 7
      %p142 = scmp.ne.s32.totalorder %s137, %s139
      %p143 = scmp.eq.s32.totalorder %s19, 0
      %p144 = por %p142, %p143
      %p145 = scmp.ne.s32.totalorder %s137, %s139
      %p146 = scmp.eq.s32.totalorder %s24, 7
      %p147 = por %p145, %p146
      %p148 = scmp.ne.s32.totalorder %s139, %s140
      %p149 = scmp.eq.s32.totalorder %s24, 0
      %p150 = por %p148, %p149
      %p151 = scmp.ne.s32.totalorder %s139, %s140
      %p152 = scmp.eq.s32.totalorder %s25, 7
      %p153 = por %p151, %p152
      %p155 = scmp.ne.s32.totalorder %s140, %s154
      %p156 = scmp.eq.s32.totalorder %s25, 0
      %p157 = por %p155, %p156
      %s159 = sadd.s32 %s158, 1
      %p162 = scmp.eq.s32.totalorder %s19, 7
      %p163 = scmp.ne.s32.totalorder %s158, %s160
      %p164 = scmp.eq.s32.totalorder %s19, 0
      %p165 = por %p163, %p164
      %p166 = scmp.ne.s32.totalorder %s158, %s160
      %p167 = scmp.eq.s32.totalorder %s24, 7
      %p168 = por %p166, %p167
      %p169 = scmp.ne.s32.totalorder %s160, %s161
      %p170 = scmp.eq.s32.totalorder %s24, 0
      %p171 = por %p169, %p170
      %p172 = scmp.ne.s32.totalorder %s160, %s161
      %p173 = scmp.eq.s32.totalorder %s25, 7
      %p174 = por %p172, %p173
      %p176 = scmp.ne.s32.totalorder %s161, %s175
      %p177 = scmp.eq.s32.totalorder %s25, 0
      %p178 = por %p176, %p177
      %p179 = scmp.le.s32.totalorder 1, %s19
      %p180 = scmp.lt.s32.totalorder %s19, 9
      %p181 = pnand %p179, %p180
      %p182 = pneg %p181
      // Predicated region
      $region9: #{model_forward.1} parent=5 // pred_check
        _
      $region10: #{model_forward.1} parent=5 // pred_check_branch
        %184 = sbr.rel (%p181) target = $region12
      $region11: #{model_forward.1} parent=5 // pred_region
        %s185 = ssub.s32 %s19, 1
        // Predicated region
        $region13: #{model_forward.1} parent=11 // pred_check
          %p186 = pneg %p40
        $region14: #{model_forward.1} parent=11 // pred_check_branch
          %188 = sbr.rel (%p186) target = $region16
        $region15: #{model_forward.1} parent=11 // pred_region
          _
        $region16: #{model_forward.1} parent=11 // pred_fallthru
          _
        // Predicated region
        $region17: #{model_forward.1} parent=11 // pred_check
          %p189 = pneg %p61
        $region18: #{model_forward.1} parent=11 // pred_check_branch
          %191 = sbr.rel (%p189) target = $region20
        $region19: #{model_forward.1} parent=11 // pred_region
          %s193 = ssub.s32 8192, 8192
          %194 = vsyncadd [#allocation5], %s193
          %s195 = sshll.u32 [#allocation4], 4
          %s196 = int_to_ptr.vmem [resolvable:$true] %s195
          %201 = dma.hbm_to_vmem [thread:$0]  %s1, 8192, %s196, [#allocation5], 256, 256, 16
        $region20: #{model_forward.1} parent=11 // pred_fallthru
          _
        // Predicated region
        $region21: #{model_forward.1} parent=11 // pred_check
          %p202 = pneg %p108
        $region22: #{model_forward.1} parent=11 // pred_check_branch
          %204 = sbr.rel (%p202) target = $region24
        $region23: #{model_forward.1} parent=11 // pred_region
          %s206 = ssub.s32 8192, 8192
          %207 = vsyncadd [#allocation8], %s206
          %s208 = sshll.u32 [#allocation9], 4
          %s209 = int_to_ptr.vmem [resolvable:$true] %s208
          %214 = dma.hbm_to_vmem [thread:$0]  %s3, 8192, %s209, [#allocation8], 64, 64, 4
        $region24: #{model_forward.1} parent=11 // pred_fallthru
          _
        // Predicated region
        $region25: #{model_forward.1} parent=11 // pred_check
          %p215 = pneg %p129
        $region26: #{model_forward.1} parent=11 // pred_check_branch
          %217 = sbr.rel (%p215) target = $region28
        $region27: #{model_forward.1} parent=11 // pred_region
          %s219 = ssub.s32 1024, 1024
          %220 = vsyncadd [#allocation11], %s219
          %s221 = sshll.u32 [#allocation10], 4
          %s222 = int_to_ptr.vmem [resolvable:$true] %s221
          %227 = dma.hbm_to_vmem [thread:$0]  %s4, 1024, %s222, [#allocation11], 512, 512, 32
        $region28: #{model_forward.1} parent=11 // pred_fallthru
          _
      $region12: #{model_forward.1} parent=5 // pred_fallthru
        _
      %p228 = scmp.lt.s32.totalorder %s19, 8
      // Predicated region
      $region29: #{model_forward.1} parent=5 // pred_check
        %p229 = pneg %p228
      $region30: #{model_forward.1} parent=5 // pred_check_branch
        %231 = sbr.rel (%p229) target = $region32
      $region31: #{model_forward.1} parent=5 // pred_region
        // Predicated region
        $region33: #{model_forward.1} parent=31 // pred_check
          %p232 = pneg %p81
        $region34: #{model_forward.1} parent=31 // pred_check_branch
          %234 = sbr.rel (%p232) target = $region36
        $region35: #{model_forward.1} parent=31 // pred_region
          %s235 = sand.u32 %s19, 1
          %s236 = scalar_lea.sflag [#allocation8], %s235
          %s237 = sand.u32 %s71, 1
          %s238 = smul.addr %s237, 1024
          %s239 = scalar_lea.vmem [#allocation7], %s238
          %s241 = ssub.s32 16384, 16384
          %242 = vsyncadd %s236, %s241
          %s243 = smul.addr %s19, 256
          %s244 = smul.addr %s243, 64
          %s245 = scalar_lea.hbm %s2, %s244
          %s246 = sshll.u32 %s239, 4
          %s247 = int_to_ptr.vmem [resolvable:$true] %s246
          %252 = dma.hbm_to_vmem [thread:$0]  %s245, 16384, %s247, %s236, 256, 256, 16
        $region36: #{model_forward.1} parent=31 // pred_fallthru
          _
      $region32: #{model_forward.1} parent=5 // pred_fallthru
        _
      %p253 = scmp.le.s32.totalorder 1, %s19
      %p254 = scmp.lt.s32.totalorder %s19, 9
      %p255 = pnand %p253, %p254
      %p256 = pneg %p255
      // Predicated region
      $region37: #{model_forward.1} parent=5 // pred_check
        _
      $region38: #{model_forward.1} parent=5 // pred_check_branch
        %258 = sbr.rel (%p255) target = $region40
      $region39: #{model_forward.1} parent=5 // pred_region
        %s259 = ssub.s32 %s19, 1
        // Predicated region
        $region41: #{model_forward.1} parent=39 // pred_check
          %p260 = pneg %p61
        $region42: #{model_forward.1} parent=39 // pred_check_branch
          %262 = sbr.rel (%p260) target = $region44
        $region43: #{model_forward.1} parent=39 // pred_region
          %263 = dma.done [#allocation5], 8192
        $region44: #{model_forward.1} parent=39 // pred_fallthru
          _
        %s264 = sand.u32 %s24, 1
        %s265 = scalar_lea.sflag [#allocation8], %s264
        %s266 = sand.u32 %s74, 1
        %s267 = smul.addr %s266, 1024
        %s268 = scalar_lea.vmem [#allocation7], %s267
        // Predicated region
        $region45: #{model_forward.1} parent=39 // pred_check
          %p269 = pneg %p87
        $region46: #{model_forward.1} parent=39 // pred_check_branch
          %271 = sbr.rel (%p269) target = $region48
        $region47: #{model_forward.1} parent=39 // pred_region
          %272 = dma.done %s265, 16384
        $region48: #{model_forward.1} parent=39 // pred_fallthru
          _
        // Predicated region
        $region49: #{model_forward.1} parent=39 // pred_check
          %p273 = pneg %p108
        $region50: #{model_forward.1} parent=39 // pred_check_branch
          %275 = sbr.rel (%p273) target = $region52
        $region51: #{model_forward.1} parent=39 // pred_region
          %276 = dma.done [#allocation8], 8192
        $region52: #{model_forward.1} parent=39 // pred_fallthru
          _
        // Predicated region
        $region53: #{model_forward.1} parent=39 // pred_check
          %p277 = pneg %p129
        $region54: #{model_forward.1} parent=39 // pred_check_branch
          %279 = sbr.rel (%p277) target = $region56
        $region55: #{model_forward.1} parent=39 // pred_region
          %280 = dma.done [#allocation11], 1024
        $region56: #{model_forward.1} parent=39 // pred_fallthru
          _
        %p281 = pneg %p40
        %p282 = pneg %p37
        %p283 = pneg %p61
        %p284 = pneg %p58
        %s285 = sand.u32 %s24, 1
        %s286 = scalar_lea.sflag [#allocation8], %s285
        %s287 = sand.u32 %s74, 1
        %s288 = smul.addr %s287, 1024
        %s289 = scalar_lea.vmem [#allocation7], %s288
        %p290 = pneg %p87
        %p291 = pneg %p84
        %p292 = pneg %p108
        %p293 = pneg %p105
        %p294 = pneg %p129
        %p295 = pneg %p126
        %p296 = pneg %p150
        %p297 = pneg %p147
        %p298 = pneg %p171
        %p299 = pneg %p168
        %v301 = vld [vmem:[%s0] sm:$0xf]
        %p302 = scmp.eq.s32.totalorder %s24, 0
        // Predicated region
        $region57: #{model_forward.1} parent=39 // pred_check
          %p303 = pneg %p302
        $region58: #{model_forward.1} parent=39 // pred_check_branch
          %305 = sbr.rel (%p303) target = $region60
        $region59: #{model_forward.1} parent=39 // pred_region
          %v306 = vld [vmem:[#allocation4] sm:$0xff]
          %v307 = vld [vmem:[#allocation4 + $0x8] sm:$0xff]
          %v308 = vld [vmem:[#allocation4 + $0x10] sm:$0xff]
          %v309 = vld [vmem:[#allocation4 + $0x18] sm:$0xff]
          %v310 = vld [vmem:[#allocation4 + $0x20] sm:$0xff]
          %v311 = vld [vmem:[#allocation4 + $0x28] sm:$0xff]
          %v312 = vld [vmem:[#allocation4 + $0x30] sm:$0xff]
          %v313 = vld [vmem:[#allocation4 + $0x38] sm:$0xff]
          %v314 = vld [vmem:[#allocation4 + $0x40] sm:$0xff]
          %v315 = vld [vmem:[#allocation4 + $0x48] sm:$0xff]
          %v316 = vld [vmem:[#allocation4 + $0x50] sm:$0xff]
          %v317 = vld [vmem:[#allocation4 + $0x58] sm:$0xff]
          %v318 = vld [vmem:[#allocation4 + $0x60] sm:$0xff]
          %v319 = vld [vmem:[#allocation4 + $0x68] sm:$0xff]
          %v320 = vld [vmem:[#allocation4 + $0x70] sm:$0xff]
          %v321 = vld [vmem:[#allocation4 + $0x78] sm:$0xff]
          %v322 = vld [vmem:[#allocation4 + $0x80] sm:$0xff]
          %v323 = vld [vmem:[#allocation4 + $0x88] sm:$0xff]
          %v324 = vld [vmem:[#allocation4 + $0x90] sm:$0xff]
          %v325 = vld [vmem:[#allocation4 + $0x98] sm:$0xff]
          %v326 = vld [vmem:[#allocation4 + $0xa0] sm:$0xff]
          %v327 = vld [vmem:[#allocation4 + $0xa8] sm:$0xff]
          %v328 = vld [vmem:[#allocation4 + $0xb0] sm:$0xff]
          %v329 = vld [vmem:[#allocation4 + $0xb8] sm:$0xff]
          %v330 = vld [vmem:[#allocation4 + $0xc0] sm:$0xff]
          %v331 = vld [vmem:[#allocation4 + $0xc8] sm:$0xff]
          %v332 = vld [vmem:[#allocation4 + $0xd0] sm:$0xff]
          %v333 = vld [vmem:[#allocation4 + $0xd8] sm:$0xff]
          %v334 = vld [vmem:[#allocation4 + $0xe0] sm:$0xff]
          %v335 = vld [vmem:[#allocation4 + $0xe8] sm:$0xff]
          %v336 = vld [vmem:[#allocation4 + $0xf0] sm:$0xff]
          %v337 = vld [vmem:[#allocation4 + $0xf8] sm:$0xff]
          %v338 = vld [vmem:[#allocation10] ss:$8 sm:$0xf]
          %v340 = vlaneseq
          %v341 = vshrl.u32 %v340, 7
          %v342 = vsub.s32 0, %v341
          %v343 = vrot.slane %v338, %v342
          %v344 = vlaneseq
          %v345 = vshrl.u32 %v344, 7
          %v346 = vsub.s32 1, %v345
          %v347 = vrot.slane %v338, %v346
          %v348 = vlaneseq
          %v349 = vshrl.u32 %v348, 7
          %v350 = vsub.s32 2, %v349
          %v351 = vrot.slane %v338, %v350
          %v352 = vlaneseq
          %v353 = vshrl.u32 %v352, 7
          %v354 = vsub.s32 3, %v353
          %v355 = vrot.slane %v338, %v354
          %v392 = vunpack.c.l.b16 %v306
          %v393 = vunpack.c.h.b16 %v306
          %v394 = vunpack.c.l.b16 %v307
          %v395 = vunpack.c.h.b16 %v307
          %v396 = vunpack.c.l.b16 %v308
          %v397 = vunpack.c.h.b16 %v308
          %v398 = vunpack.c.l.b16 %v309
          %v399 = vunpack.c.h.b16 %v309
          %v400 = vunpack.c.l.b16 %v310
          %v401 = vunpack.c.h.b16 %v310
          %v402 = vunpack.c.l.b16 %v311
          %v403 = vunpack.c.h.b16 %v311
          %v404 = vunpack.c.l.b16 %v312
          %v405 = vunpack.c.h.b16 %v312
          %v406 = vunpack.c.l.b16 %v313
          %v407 = vunpack.c.h.b16 %v313
          %v408 = vunpack.c.l.b16 %v314
          %v409 = vunpack.c.h.b16 %v314
          %v410 = vunpack.c.l.b16 %v315
          %v411 = vunpack.c.h.b16 %v315
          %v412 = vunpack.c.l.b16 %v316
          %v413 = vunpack.c.h.b16 %v316
          %v414 = vunpack.c.l.b16 %v317
          %v415 = vunpack.c.h.b16 %v317
          %v416 = vunpack.c.l.b16 %v318
          %v417 = vunpack.c.h.b16 %v318
          %v418 = vunpack.c.l.b16 %v319
          %v419 = vunpack.c.h.b16 %v319
          %v420 = vunpack.c.l.b16 %v320
          %v421 = vunpack.c.h.b16 %v320
          %v422 = vunpack.c.l.b16 %v321
          %v423 = vunpack.c.h.b16 %v321
          %v424 = vunpack.c.l.b16 %v322
          %v425 = vunpack.c.h.b16 %v322
          %v426 = vunpack.c.l.b16 %v323
          %v427 = vunpack.c.h.b16 %v323
          %v428 = vunpack.c.l.b16 %v324
          %v429 = vunpack.c.h.b16 %v324
          %v430 = vunpack.c.l.b16 %v325
          %v431 = vunpack.c.h.b16 %v325
          %v432 = vunpack.c.l.b16 %v326
          %v433 = vunpack.c.h.b16 %v326
          %v434 = vunpack.c.l.b16 %v327
          %v435 = vunpack.c.h.b16 %v327
          %v436 = vunpack.c.l.b16 %v328
          %v437 = vunpack.c.h.b16 %v328
          %v438 = vunpack.c.l.b16 %v329
          %v439 = vunpack.c.h.b16 %v329
          %v440 = vunpack.c.l.b16 %v330
          %v441 = vunpack.c.h.b16 %v330
          %v442 = vunpack.c.l.b16 %v331
          %v443 = vunpack.c.h.b16 %v331
          %v444 = vunpack.c.l.b16 %v332
          %v445 = vunpack.c.h.b16 %v332
          %v446 = vunpack.c.l.b16 %v333
          %v447 = vunpack.c.h.b16 %v333
          %v448 = vunpack.c.l.b16 %v334
          %v449 = vunpack.c.h.b16 %v334
          %v450 = vunpack.c.l.b16 %v335
          %v451 = vunpack.c.h.b16 %v335
          %v452 = vunpack.c.l.b16 %v336
          %v453 = vunpack.c.h.b16 %v336
          %v454 = vunpack.c.l.b16 %v337
          %v455 = vunpack.c.h.b16 %v337
          %v456 = vpack.c.b16 %v396, %v392
          %v457 = vpack.c.b16 %v397, %v393
          %v458 = vpack.c.b16 %v398, %v394
          %v459 = vpack.c.b16 %v399, %v395
          %v460 = vpack.c.b16 %v404, %v400
          %v461 = vpack.c.b16 %v405, %v401
          %v462 = vpack.c.b16 %v406, %v402
          %v463 = vpack.c.b16 %v407, %v403
          %v464 = vpack.c.b16 %v412, %v408
          %v465 = vpack.c.b16 %v413, %v409
          %v466 = vpack.c.b16 %v414, %v410
          %v467 = vpack.c.b16 %v415, %v411
          %v468 = vpack.c.b16 %v420, %v416
          %v469 = vpack.c.b16 %v421, %v417
          %v470 = vpack.c.b16 %v422, %v418
          %v471 = vpack.c.b16 %v423, %v419
          %v472 = vpack.c.b16 %v428, %v424
          %v473 = vpack.c.b16 %v429, %v425
          %v474 = vpack.c.b16 %v430, %v426
          %v475 = vpack.c.b16 %v431, %v427
          %v476 = vpack.c.b16 %v436, %v432
          %v477 = vpack.c.b16 %v437, %v433
          %v478 = vpack.c.b16 %v438, %v434
          %v479 = vpack.c.b16 %v439, %v435
          %v480 = vpack.c.b16 %v444, %v440
          %v481 = vpack.c.b16 %v445, %v441
          %v482 = vpack.c.b16 %v446, %v442
          %v483 = vpack.c.b16 %v447, %v443
          %v484 = vpack.c.b16 %v452, %v448
          %v485 = vpack.c.b16 %v453, %v449
          %v486 = vpack.c.b16 %v454, %v450
          %v487 = vpack.c.b16 %v455, %v451
          %520 = vmatprep.subr.bf16.mxu0 %v457
          %521 = vmatpush1.bf16.msra.mxu0 %v456
          %522 = vmatprep.subr.bf16.mxu0 %v461
          %523 = vmatpush1.bf16.msra.mxu0 %v460
          %524 = vmatprep.subr.bf16.mxu0 %v465
          %525 = vmatpush1.bf16.msra.mxu0 %v464
          %526 = vmatprep.subr.bf16.mxu0 %v469
          %527 = vmatpush1.bf16.msra.mxu0 %v468
          %528 = vmatprep.subr.bf16.mxu0 %v473
          %529 = vmatpush1.bf16.msra.mxu0 %v472
          %530 = vmatprep.subr.bf16.mxu0 %v477
          %531 = vmatpush1.bf16.msra.mxu0 %v476
          %532 = vmatprep.subr.bf16.mxu0 %v481
          %533 = vmatpush1.bf16.msra.mxu0 %v480
          %534 = vmatprep.subr.bf16.mxu0 %v485
          %535 = vmatpush1.bf16.msra.mxu0 %v484
          %536 = vmatprep.subr.bf16.mxu0 0
          %537 = vmatpush1.bf16.msra.mxu0 0
          %538 = vmatprep.subr.bf16.mxu0 0
          %539 = vmatpush1.bf16.msra.mxu0 0
          %540 = vmatprep.subr.bf16.mxu0 0
          %541 = vmatpush1.bf16.msra.mxu0 0
          %542 = vmatprep.subr.bf16.mxu0 0
          %543 = vmatpush1.bf16.msra.mxu0 0
          %544 = vmatprep.subr.bf16.mxu0 0
          %545 = vmatpush1.bf16.msra.mxu0 0
          %546 = vmatprep.subr.bf16.mxu0 0
          %547 = vmatpush1.bf16.msra.mxu0 0
          %548 = vmatprep.subr.bf16.mxu0 0
          %549 = vmatpush1.bf16.msra.mxu0 0
          %550 = vmatprep.subr.bf16.mxu0 0
          %551 = vmatpush1.bf16.msra.mxu0 0
          %552 = vmatprep.mubr.bf16.mxu0 0
          %553 = vmatmul.mubr.bf16.gmra.mrb[0].mxu0 %v301
          %v554 = vpop.f32.mrb[0].mxu0
          %v555 = vadd.f32 %v343, %v554
          %v556 = vpop.f32.mrb[0].mxu0
          %v557 = vadd.f32 %v347, %v556
          %v558 = vpop.f32.mrb[0].mxu0
          %v559 = vpop.f32.mrb[0].mxu0
          %560 = vdwg.mxu0
          %561 = vmatprep.subr.bf16.mxu0 %v459
          %562 = vmatpush1.bf16.msra.mxu0 %v458
          %563 = vmatprep.subr.bf16.mxu0 %v463
          %564 = vmatpush1.bf16.msra.mxu0 %v462
          %565 = vmatprep.subr.bf16.mxu0 %v467
          %566 = vmatpush1.bf16.msra.mxu0 %v466
          %567 = vmatprep.subr.bf16.mxu0 %v471
          %568 = vmatpush1.bf16.msra.mxu0 %v470
          %569 = vmatprep.subr.bf16.mxu0 %v475
          %570 = vmatpush1.bf16.msra.mxu0 %v474
          %571 = vmatprep.subr.bf16.mxu0 %v479
          %572 = vmatpush1.bf16.msra.mxu0 %v478
          %573 = vmatprep.subr.bf16.mxu0 %v483
          %574 = vmatpush1.bf16.msra.mxu0 %v482
          %575 = vmatprep.subr.bf16.mxu0 %v487
          %576 = vmatpush1.bf16.msra.mxu0 %v486
          %577 = vmatprep.subr.bf16.mxu0 0
          %578 = vmatpush1.bf16.msra.mxu0 0
          %579 = vmatprep.subr.bf16.mxu0 0
          %580 = vmatpush1.bf16.msra.mxu0 0
          %581 = vmatprep.subr.bf16.mxu0 0
          %582 = vmatpush1.bf16.msra.mxu0 0
          %583 = vmatprep.subr.bf16.mxu0 0
          %584 = vmatpush1.bf16.msra.mxu0 0
          %585 = vmatprep.subr.bf16.mxu0 0
          %586 = vmatpush1.bf16.msra.mxu0 0
          %587 = vmatprep.subr.bf16.mxu0 0
          %588 = vmatpush1.bf16.msra.mxu0 0
          %589 = vmatprep.subr.bf16.mxu0 0
          %590 = vmatpush1.bf16.msra.mxu0 0
          %591 = vmatprep.subr.bf16.mxu0 0
          %592 = vmatpush1.bf16.msra.mxu0 0
          %593 = vmatprep.mubr.bf16.mxu0 0
          %594 = vmatmul.mubr.bf16.gmra.mrb[0].mxu0 %v301
          %v595 = vpop.f32.mrb[0].mxu0
          %v596 = vadd.f32 %v351, %v595
          %v597 = vpop.f32.mrb[0].mxu0
          %v598 = vadd.f32 %v355, %v597
          %v599 = vpop.f32.mrb[0].mxu0
          %v600 = vpop.f32.mrb[0].mxu0
          %601 = vdwg.mxu0
          %v602 = vmax.f32 %v555, 0.0
          %v603 = vmax.f32 %v557, 0.0
          %v604 = vmax.f32 %v596, 0.0
          %v605 = vmax.f32 %v598, 0.0
          %v606 = vpack.c.bf16 %v602, %v602
          %v607 = vpack.c.bf16 %v603, %v603
          %v608 = vpack.c.bf16 %v604, %v604
          %v609 = vpack.c.bf16 %v605, %v605
          %v614 = vunpack.c.l.b16 %v606
          %v615 = vunpack.c.l.b16 %v607
          %v616 = vunpack.c.l.b16 %v608
          %v617 = vunpack.c.l.b16 %v609
          %v618 = vpack.c.b16 %v615, %v614
          %v619 = vpack.c.b16 %v617, %v616
          %622 = vst [vmem:[#allocation2] sm:$0xff] %v618
          %623 = vst [vmem:[#allocation2 + $0x8] sm:$0xff] %v619
          %s624 = scalar_lea.vmem [#allocation4], 256
          %v625 = vld [vmem:[%s624] sm:$0xff]
          %v626 = vld [vmem:[%s624 + $0x8] sm:$0xff]
          %v627 = vld [vmem:[%s624 + $0x10] sm:$0xff]
          %v628 = vld [vmem:[%s624 + $0x18] sm:$0xff]
          %v629 = vld [vmem:[%s624 + $0x20] sm:$0xff]
          %v630 = vld [vmem:[%s624 + $0x28] sm:$0xff]
          %v631 = vld [vmem:[%s624 + $0x30] sm:$0xff]
          %v632 = vld [vmem:[%s624 + $0x38] sm:$0xff]
          %v633 = vld [vmem:[%s624 + $0x40] sm:$0xff]
          %v634 = vld [vmem:[%s624 + $0x48] sm:$0xff]
          %v635 = vld [vmem:[%s624 + $0x50] sm:$0xff]
          %v636 = vld [vmem:[%s624 + $0x58] sm:$0xff]
          %v637 = vld [vmem:[%s624 + $0x60] sm:$0xff]
          %v638 = vld [vmem:[%s624 + $0x68] sm:$0xff]
          %v639 = vld [vmem:[%s624 + $0x70] sm:$0xff]
          %v640 = vld [vmem:[%s624 + $0x78] sm:$0xff]
          %v641 = vld [vmem:[%s624 + $0x80] sm:$0xff]
          %v642 = vld [vmem:[%s624 + $0x88] sm:$0xff]
          %v643 = vld [vmem:[%s624 + $0x90] sm:$0xff]
          %v644 = vld [vmem:[%s624 + $0x98] sm:$0xff]
          %v645 = vld [vmem:[%s624 + $0xa0] sm:$0xff]
          %v646 = vld [vmem:[%s624 + $0xa8] sm:$0xff]
          %v647 = vld [vmem:[%s624 + $0xb0] sm:$0xff]
          %v648 = vld [vmem:[%s624 + $0xb8] sm:$0xff]
          %v649 = vld [vmem:[%s624 + $0xc0] sm:$0xff]
          %v650 = vld [vmem:[%s624 + $0xc8] sm:$0xff]
          %v651 = vld [vmem:[%s624 + $0xd0] sm:$0xff]
          %v652 = vld [vmem:[%s624 + $0xd8] sm:$0xff]
          %v653 = vld [vmem:[%s624 + $0xe0] sm:$0xff]
          %v654 = vld [vmem:[%s624 + $0xe8] sm:$0xff]
          %v655 = vld [vmem:[%s624 + $0xf0] sm:$0xff]
          %v656 = vld [vmem:[%s624 + $0xf8] sm:$0xff]
          %v689 = vunpack.c.l.b16 %v625
          %v690 = vunpack.c.h.b16 %v625
          %v691 = vunpack.c.l.b16 %v626
          %v692 = vunpack.c.h.b16 %v626
          %v693 = vunpack.c.l.b16 %v627
          %v694 = vunpack.c.h.b16 %v627
          %v695 = vunpack.c.l.b16 %v628
          %v696 = vunpack.c.h.b16 %v628
          %v697 = vunpack.c.l.b16 %v629
          %v698 = vunpack.c.h.b16 %v629
          %v699 = vunpack.c.l.b16 %v630
          %v700 = vunpack.c.h.b16 %v630
          %v701 = vunpack.c.l.b16 %v631
          %v702 = vunpack.c.h.b16 %v631
          %v703 = vunpack.c.l.b16 %v632
          %v704 = vunpack.c.h.b16 %v632
          %v705 = vunpack.c.l.b16 %v633
          %v706 = vunpack.c.h.b16 %v633
          %v707 = vunpack.c.l.b16 %v634
          %v708 = vunpack.c.h.b16 %v634
          %v709 = vunpack.c.l.b16 %v635
          %v710 = vunpack.c.h.b16 %v635
          %v711 = vunpack.c.l.b16 %v636
          %v712 = vunpack.c.h.b16 %v636
          %v713 = vunpack.c.l.b16 %v637
          %v714 = vunpack.c.h.b16 %v637
          %v715 = vunpack.c.l.b16 %v638
          %v716 = vunpack.c.h.b16 %v638
          %v717 = vunpack.c.l.b16 %v639
          %v718 = vunpack.c.h.b16 %v639
          %v719 = vunpack.c.l.b16 %v640
          %v720 = vunpack.c.h.b16 %v640
          %v721 = vunpack.c.l.b16 %v641
          %v722 = vunpack.c.h.b16 %v641
          %v723 = vunpack.c.l.b16 %v642
          %v724 = vunpack.c.h.b16 %v642
          %v725 = vunpack.c.l.b16 %v643
          %v726 = vunpack.c.h.b16 %v643
          %v727 = vunpack.c.l.b16 %v644
          %v728 = vunpack.c.h.b16 %v644
          %v729 = vunpack.c.l.b16 %v645
          %v730 = vunpack.c.h.b16 %v645
          %v731 = vunpack.c.l.b16 %v646
          %v732 = vunpack.c.h.b16 %v646
          %v733 = vunpack.c.l.b16 %v647
          %v734 = vunpack.c.h.b16 %v647
          %v735 = vunpack.c.l.b16 %v648
          %v736 = vunpack.c.h.b16 %v648
          %v737 = vunpack.c.l.b16 %v649
          %v738 = vunpack.c.h.b16 %v649
          %v739 = vunpack.c.l.b16 %v650
          %v740 = vunpack.c.h.b16 %v650
          %v741 = vunpack.c.l.b16 %v651
          %v742 = vunpack.c.h.b16 %v651
          %v743 = vunpack.c.l.b16 %v652
          %v744 = vunpack.c.h.b16 %v652
          %v745 = vunpack.c.l.b16 %v653
          %v746 = vunpack.c.h.b16 %v653
          %v747 = vunpack.c.l.b16 %v654
          %v748 = vunpack.c.h.b16 %v654
          %v749 = vunpack.c.l.b16 %v655
          %v750 = vunpack.c.h.b16 %v655
          %v751 = vunpack.c.l.b16 %v656
          %v752 = vunpack.c.h.b16 %v656
          %v753 = vpack.c.b16 %v693, %v689
          %v754 = vpack.c.b16 %v694, %v690
          %v755 = vpack.c.b16 %v695, %v691
          %v756 = vpack.c.b16 %v696, %v692
          %v757 = vpack.c.b16 %v701, %v697
          %v758 = vpack.c.b16 %v702, %v698
          %v759 = vpack.c.b16 %v703, %v699
          %v760 = vpack.c.b16 %v704, %v700
          %v761 = vpack.c.b16 %v709, %v705
          %v762 = vpack.c.b16 %v710, %v706
          %v763 = vpack.c.b16 %v711, %v707
          %v764 = vpack.c.b16 %v712, %v708
          %v765 = vpack.c.b16 %v717, %v713
          %v766 = vpack.c.b16 %v718, %v714
          %v767 = vpack.c.b16 %v719, %v715
          %v768 = vpack.c.b16 %v720, %v716
          %v769 = vpack.c.b16 %v725, %v721
          %v770 = vpack.c.b16 %v726, %v722
          %v771 = vpack.c.b16 %v727, %v723
          %v772 = vpack.c.b16 %v728, %v724
          %v773 = vpack.c.b16 %v733, %v729
          %v774 = vpack.c.b16 %v734, %v730
          %v775 = vpack.c.b16 %v735, %v731
          %v776 = vpack.c.b16 %v736, %v732
          %v777 = vpack.c.b16 %v741, %v737
          %v778 = vpack.c.b16 %v742, %v738
          %v779 = vpack.c.b16 %v743, %v739
          %v780 = vpack.c.b16 %v744, %v740
          %v781 = vpack.c.b16 %v749, %v745
          %v782 = vpack.c.b16 %v750, %v746
          %v783 = vpack.c.b16 %v751, %v747
          %v784 = vpack.c.b16 %v752, %v748
          %817 = vmatprep.subr.bf16.mxu0 %v754
          %818 = vmatpush1.bf16.msra.mxu0 %v753
          %819 = vmatprep.subr.bf16.mxu0 %v758
          %820 = vmatpush1.bf16.msra.mxu0 %v757
          %821 = vmatprep.subr.bf16.mxu0 %v762
          %822 = vmatpush1.bf16.msra.mxu0 %v761
          %823 = vmatprep.subr.bf16.mxu0 %v766
          %824 = vmatpush1.bf16.msra.mxu0 %v765
          %825 = vmatprep.subr.bf16.mxu0 %v770
          %826 = vmatpush1.bf16.msra.mxu0 %v769
          %827 = vmatprep.subr.bf16.mxu0 %v774
          %828 = vmatpush1.bf16.msra.mxu0 %v773
          %829 = vmatprep.subr.bf16.mxu0 %v778
          %830 = vmatpush1.bf16.msra.mxu0 %v777
          %831 = vmatprep.subr.bf16.mxu0 %v782
          %832 = vmatpush1.bf16.msra.mxu0 %v781
          %833 = vmatprep.subr.bf16.mxu0 0
          %834 = vmatpush1.bf16.msra.mxu0 0
          %835 = vmatprep.subr.bf16.mxu0 0
          %836 = vmatpush1.bf16.msra.mxu0 0
          %837 = vmatprep.subr.bf16.mxu0 0
          %838 = vmatpush1.bf16.msra.mxu0 0
          %839 = vmatprep.subr.bf16.mxu0 0
          %840 = vmatpush1.bf16.msra.mxu0 0
          %841 = vmatprep.subr.bf16.mxu0 0
          %842 = vmatpush1.bf16.msra.mxu0 0
          %843 = vmatprep.subr.bf16.mxu0 0
          %844 = vmatpush1.bf16.msra.mxu0 0
          %845 = vmatprep.subr.bf16.mxu0 0
          %846 = vmatpush1.bf16.msra.mxu0 0
          %847 = vmatprep.subr.bf16.mxu0 0
          %848 = vmatpush1.bf16.msra.mxu0 0
          %849 = vmatprep.mubr.bf16.mxu0 0
          %850 = vmatmul.mubr.bf16.gmra.mrb[0].mxu0 %v301
          %v851 = vpop.f32.mrb[0].mxu0
          %v852 = vadd.f32 0.0, %v851
          %v853 = vpop.f32.mrb[0].mxu0
          %v854 = vadd.f32 0.0, %v853
          %v855 = vpop.f32.mrb[0].mxu0
          %v856 = vpop.f32.mrb[0].mxu0
          %857 = vdwg.mxu0
          %858 = vmatprep.subr.bf16.mxu0 %v756
          %859 = vmatpush1.bf16.msra.mxu0 %v755
          %860 = vmatprep.subr.bf16.mxu0 %v760
          %861 = vmatpush1.bf16.msra.mxu0 %v759
          %862 = vmatprep.subr.bf16.mxu0 %v764
          %863 = vmatpush1.bf16.msra.mxu0 %v763
          %864 = vmatprep.subr.bf16.mxu0 %v768
          %865 = vmatpush1.bf16.msra.mxu0 %v767
          %866 = vmatprep.subr.bf16.mxu0 %v772
          %867 = vmatpush1.bf16.msra.mxu0 %v771
          %868 = vmatprep.subr.bf16.mxu0 %v776
          %869 = vmatpush1.bf16.msra.mxu0 %v775
          %870 = vmatprep.subr.bf16.mxu0 %v780
          %871 = vmatpush1.bf16.msra.mxu0 %v779
          %872 = vmatprep.subr.bf16.mxu0 %v784
          %873 = vmatpush1.bf16.msra.mxu0 %v783
          %874 = vmatprep.subr.bf16.mxu0 0
          %875 = vmatpush1.bf16.msra.mxu0 0
          %876 = vmatprep.subr.bf16.mxu0 0
          %877 = vmatpush1.bf16.msra.mxu0 0
          %878 = vmatprep.subr.bf16.mxu0 0
          %879 = vmatpush1.bf16.msra.mxu0 0
          %880 = vmatprep.subr.bf16.mxu0 0
          %881 = vmatpush1.bf16.msra.mxu0 0
          %882 = vmatprep.subr.bf16.mxu0 0
          %883 = vmatpush1.bf16.msra.mxu0 0
          %884 = vmatprep.subr.bf16.mxu0 0
          %885 = vmatpush1.bf16.msra.mxu0 0
          %886 = vmatprep.subr.bf16.mxu0 0
          %887 = vmatpush1.bf16.msra.mxu0 0
          %888 = vmatprep.subr.bf16.mxu0 0
          %889 = vmatpush1.bf16.msra.mxu0 0
          %890 = vmatprep.mubr.bf16.mxu0 0
          %891 = vmatmul.mubr.bf16.gmra.mrb[0].mxu0 %v301
          %v892 = vpop.f32.mrb[0].mxu0
          %v893 = vadd.f32 0.0, %v892
          %v894 = vpop.f32.mrb[0].mxu0
          %v895 = vadd.f32 0.0, %v894
          %v896 = vpop.f32.mrb[0].mxu0
          %v897 = vpop.f32.mrb[0].mxu0
          %898 = vdwg.mxu0
          %899 = vst [vmem:[#allocation3] sm:$0xff] %v852
          %900 = vst [vmem:[#allocation3 + $0x8] sm:$0xff] %v854
          %901 = vst [vmem:[#allocation3 + $0x10] sm:$0xff] %v893
          %902 = vst [vmem:[#allocation3 + $0x18] sm:$0xff] %v895
        $region60: #{model_forward.1} parent=39 // pred_fallthru
          _
        %v903 = vld [vmem:[#allocation2] sm:$0xff]
        %v904 = vld [vmem:[#allocation2 + $0x8] sm:$0xff]
        %p905 = scmp.eq.s32.totalorder %s24, 3
        // Predicated region
        $region61: #{model_forward.1} parent=39 // pred_check
          %p906 = pneg %p905
        $region62: #{model_forward.1} parent=39 // pred_check_branch
          %908 = sbr.rel (%p906) target = $region64
        $region63: #{model_forward.1} parent=39 // pred_region
          %v909 = vld [vmem:[#allocation9] sm:$0xf]
          %v910 = vld [vmem:[#allocation9 + $0x4] sm:$0xf]
          %v911 = vld [vmem:[#allocation9 + $0x8] sm:$0xf]
          %v912 = vld [vmem:[#allocation9 + $0xc] sm:$0xf]
          %v913 = vld [vmem:[#allocation9 + $0x10] sm:$0xf]
          %v914 = vld [vmem:[#allocation9 + $0x14] sm:$0xf]
          %v915 = vld [vmem:[#allocation9 + $0x18] sm:$0xf]
          %v916 = vld [vmem:[#allocation9 + $0x1c] sm:$0xf]
          %v917 = vld [vmem:[#allocation9 + $0x20] sm:$0xf]
          %v918 = vld [vmem:[#allocation9 + $0x24] sm:$0xf]
          %v919 = vld [vmem:[#allocation9 + $0x28] sm:$0xf]
          %v920 = vld [vmem:[#allocation9 + $0x2c] sm:$0xf]
          %v921 = vld [vmem:[#allocation9 + $0x30] sm:$0xf]
          %v922 = vld [vmem:[#allocation9 + $0x34] sm:$0xf]
          %v923 = vld [vmem:[#allocation9 + $0x38] sm:$0xf]
          %v924 = vld [vmem:[#allocation9 + $0x3c] sm:$0xf]
          %v925 = vld [vmem:[#allocation9 + $0x40] sm:$0xf]
          %v926 = vld [vmem:[#allocation9 + $0x44] sm:$0xf]
          %v927 = vld [vmem:[#allocation9 + $0x48] sm:$0xf]
          %v928 = vld [vmem:[#allocation9 + $0x4c] sm:$0xf]
          %v929 = vld [vmem:[#allocation9 + $0x50] sm:$0xf]
          %v930 = vld [vmem:[#allocation9 + $0x54] sm:$0xf]
          %v931 = vld [vmem:[#allocation9 + $0x58] sm:$0xf]
          %v932 = vld [vmem:[#allocation9 + $0x5c] sm:$0xf]
          %v933 = vld [vmem:[#allocation9 + $0x60] sm:$0xf]
          %v934 = vld [vmem:[#allocation9 + $0x64] sm:$0xf]
          %v935 = vld [vmem:[#allocation9 + $0x68] sm:$0xf]
          %v936 = vld [vmem:[#allocation9 + $0x6c] sm:$0xf]
          %v937 = vld [vmem:[#allocation9 + $0x70] sm:$0xf]
          %v938 = vld [vmem:[#allocation9 + $0x74] sm:$0xf]
          %v939 = vld [vmem:[#allocation9 + $0x78] sm:$0xf]
          %v940 = vld [vmem:[#allocation9 + $0x7c] sm:$0xf]
          %v941 = vld [vmem:[#allocation9 + $0x80] sm:$0xf]
          %v942 = vld [vmem:[#allocation9 + $0x84] sm:$0xf]
          %v943 = vld [vmem:[#allocation9 + $0x88] sm:$0xf]
          %v944 = vld [vmem:[#allocation9 + $0x8c] sm:$0xf]
          %v945 = vld [vmem:[#allocation9 + $0x90] sm:$0xf]
          %v946 = vld [vmem:[#allocation9 + $0x94] sm:$0xf]
          %v947 = vld [vmem:[#allocation9 + $0x98] sm:$0xf]
          %v948 = vld [vmem:[#allocation9 + $0x9c] sm:$0xf]
          %v949 = vld [vmem:[#allocation9 + $0xa0] sm:$0xf]
          %v950 = vld [vmem:[#allocation9 + $0xa4] sm:$0xf]
          %v951 = vld [vmem:[#allocation9 + $0xa8] sm:$0xf]
          %v952 = vld [vmem:[#allocation9 + $0xac] sm:$0xf]
          %v953 = vld [vmem:[#allocation9 + $0xb0] sm:$0xf]
          %v954 = vld [vmem:[#allocation9 + $0xb4] sm:$0xf]
          %v955 = vld [vmem:[#allocation9 + $0xb8] sm:$0xf]
          %v956 = vld [vmem:[#allocation9 + $0xbc] sm:$0xf]
          %v957 = vld [vmem:[#allocation9 + $0xc0] sm:$0xf]
          %v958 = vld [vmem:[#allocation9 + $0xc4] sm:$0xf]
          %v959 = vld [vmem:[#allocation9 + $0xc8] sm:$0xf]
          %v960 = vld [vmem:[#allocation9 + $0xcc] sm:$0xf]
          %v961 = vld [vmem:[#allocation9 + $0xd0] sm:$0xf]
          %v962 = vld [vmem:[#allocation9 + $0xd4] sm:$0xf]
          %v963 = vld [vmem:[#allocation9 + $0xd8] sm:$0xf]
          %v964 = vld [vmem:[#allocation9 + $0xdc] sm:$0xf]
          %v965 = vld [vmem:[#allocation9 + $0xe0] sm:$0xf]
          %v966 = vld [vmem:[#allocation9 + $0xe4] sm:$0xf]
          %v967 = vld [vmem:[#allocation9 + $0xe8] sm:$0xf]
          %v968 = vld [vmem:[#allocation9 + $0xec] sm:$0xf]
          %v969 = vld [vmem:[#allocation9 + $0xf0] sm:$0xf]
          %v970 = vld [vmem:[#allocation9 + $0xf4] sm:$0xf]
          %v971 = vld [vmem:[#allocation9 + $0xf8] sm:$0xf]
          %v972 = vld [vmem:[#allocation9 + $0xfc] sm:$0xf]
          %v973 = vld [vmem:[#allocation10 + $0x21] ss:$0 sm:$0xff]
          %v976 = vunpack.c.l.b16 %v903
          %v977 = vunpack.c.h.b16 %v903
          %v978 = vunpack.c.l.b16 %v904
          %v979 = vunpack.c.h.b16 %v904
          %v980 = vpack.c.b16 %v976, %v976
          %v981 = vpack.c.b16 %v977, %v977
          %v982 = vpack.c.b16 %v978, %v978
          %v983 = vpack.c.b16 %v979, %v979
          %v1052 = vunpack.c.l.b16 %v909
          %v1053 = vunpack.c.l.b16 %v910
          %v1054 = vunpack.c.l.b16 %v911
          %v1055 = vunpack.c.l.b16 %v912
          %v1056 = vunpack.c.l.b16 %v913
          %v1057 = vunpack.c.l.b16 %v914
          %v1058 = vunpack.c.l.b16 %v915
          %v1059 = vunpack.c.l.b16 %v916
          %v1060 = vunpack.c.l.b16 %v917
          %v1061 = vunpack.c.l.b16 %v918
          %v1062 = vunpack.c.l.b16 %v919
          %v1063 = vunpack.c.l.b16 %v920
          %v1064 = vunpack.c.l.b16 %v921
          %v1065 = vunpack.c.l.b16 %v922
          %v1066 = vunpack.c.l.b16 %v923
          %v1067 = vunpack.c.l.b16 %v924
          %v1068 = vunpack.c.l.b16 %v925
          %v1069 = vunpack.c.l.b16 %v926
          %v1070 = vunpack.c.l.b16 %v927
          %v1071 = vunpack.c.l.b16 %v928
          %v1072 = vunpack.c.l.b16 %v929
          %v1073 = vunpack.c.l.b16 %v930
          %v1074 = vunpack.c.l.b16 %v931
          %v1075 = vunpack.c.l.b16 %v932
          %v1076 = vunpack.c.l.b16 %v933
          %v1077 = vunpack.c.l.b16 %v934
          %v1078 = vunpack.c.l.b16 %v935
          %v1079 = vunpack.c.l.b16 %v936
          %v1080 = vunpack.c.l.b16 %v937
          %v1081 = vunpack.c.l.b16 %v938
          %v1082 = vunpack.c.l.b16 %v939
          %v1083 = vunpack.c.l.b16 %v940
          %v1084 = vunpack.c.l.b16 %v941
          %v1085 = vunpack.c.l.b16 %v942
          %v1086 = vunpack.c.l.b16 %v943
          %v1087 = vunpack.c.l.b16 %v944
          %v1088 = vunpack.c.l.b16 %v945
          %v1089 = vunpack.c.l.b16 %v946
          %v1090 = vunpack.c.l.b16 %v947
          %v1091 = vunpack.c.l.b16 %v948
          %v1092 = vunpack.c.l.b16 %v949
          %v1093 = vunpack.c.l.b16 %v950
          %v1094 = vunpack.c.l.b16 %v951
          %v1095 = vunpack.c.l.b16 %v952
          %v1096 = vunpack.c.l.b16 %v953
          %v1097 = vunpack.c.l.b16 %v954
          %v1098 = vunpack.c.l.b16 %v955
          %v1099 = vunpack.c.l.b16 %v956
          %v1100 = vunpack.c.l.b16 %v957
          %v1101 = vunpack.c.l.b16 %v958
          %v1102 = vunpack.c.l.b16 %v959
          %v1103 = vunpack.c.l.b16 %v960
          %v1104 = vunpack.c.l.b16 %v961
          %v1105 = vunpack.c.l.b16 %v962
          %v1106 = vunpack.c.l.b16 %v963
          %v1107 = vunpack.c.l.b16 %v964
          %v1108 = vunpack.c.l.b16 %v965
          %v1109 = vunpack.c.l.b16 %v966
          %v1110 = vunpack.c.l.b16 %v967
          %v1111 = vunpack.c.l.b16 %v968
          %v1112 = vunpack.c.l.b16 %v969
          %v1113 = vunpack.c.l.b16 %v970
          %v1114 = vunpack.c.l.b16 %v971
          %v1115 = vunpack.c.l.b16 %v972
          %v1116 = vpack.c.b16 %v1053, %v1052
          %v1117 = vpack.c.b16 %v1055, %v1054
          %v1118 = vpack.c.b16 %v1057, %v1056
          %v1119 = vpack.c.b16 %v1059, %v1058
          %v1120 = vpack.c.b16 %v1061, %v1060
          %v1121 = vpack.c.b16 %v1063, %v1062
          %v1122 = vpack.c.b16 %v1065, %v1064
          %v1123 = vpack.c.b16 %v1067, %v1066
          %v1124 = vpack.c.b16 %v1069, %v1068
          %v1125 = vpack.c.b16 %v1071, %v1070
          %v1126 = vpack.c.b16 %v1073, %v1072
          %v1127 = vpack.c.b16 %v1075, %v1074
          %v1128 = vpack.c.b16 %v1077, %v1076
          %v1129 = vpack.c.b16 %v1079, %v1078
          %v1130 = vpack.c.b16 %v1081, %v1080
          %v1131 = vpack.c.b16 %v1083, %v1082
          %v1132 = vpack.c.b16 %v1085, %v1084
          %v1133 = vpack.c.b16 %v1087, %v1086
          %v1134 = vpack.c.b16 %v1089, %v1088
          %v1135 = vpack.c.b16 %v1091, %v1090
          %v1136 = vpack.c.b16 %v1093, %v1092
          %v1137 = vpack.c.b16 %v1095, %v1094
          %v1138 = vpack.c.b16 %v1097, %v1096
          %v1139 = vpack.c.b16 %v1099, %v1098
          %v1140 = vpack.c.b16 %v1101, %v1100
          %v1141 = vpack.c.b16 %v1103, %v1102
          %v1142 = vpack.c.b16 %v1105, %v1104
          %v1143 = vpack.c.b16 %v1107, %v1106
          %v1144 = vpack.c.b16 %v1109, %v1108
          %v1145 = vpack.c.b16 %v1111, %v1110
          %v1146 = vpack.c.b16 %v1113, %v1112
          %v1147 = vpack.c.b16 %v1115, %v1114
          %1180 = vmatprep.subr.bf16.mxu0 0
          %1181 = vmatpush1.bf16.msra.mxu0 %v1116
          %1182 = vmatprep.subr.bf16.mxu0 0
          %1183 = vmatpush1.bf16.msra.mxu0 %v1117
          %1184 = vmatprep.subr.bf16.mxu0 0
          %1185 = vmatpush1.bf16.msra.mxu0 %v1118
          %1186 = vmatprep.subr.bf16.mxu0 0
          %1187 = vmatpush1.bf16.msra.mxu0 %v1119
          %1188 = vmatprep.subr.bf16.mxu0 0
          %1189 = vmatpush1.bf16.msra.mxu0 %v1120
          %1190 = vmatprep.subr.bf16.mxu0 0
          %1191 = vmatpush1.bf16.msra.mxu0 %v1121
          %1192 = vmatprep.subr.bf16.mxu0 0
          %1193 = vmatpush1.bf16.msra.mxu0 %v1122
          %1194 = vmatprep.subr.bf16.mxu0 0
          %1195 = vmatpush1.bf16.msra.mxu0 %v1123
          %1196 = vmatprep.subr.bf16.mxu0 0
          %1197 = vmatpush1.bf16.msra.mxu0 %v1124
          %1198 = vmatprep.subr.bf16.mxu0 0
          %1199 = vmatpush1.bf16.msra.mxu0 %v1125
          %1200 = vmatprep.subr.bf16.mxu0 0
          %1201 = vmatpush1.bf16.msra.mxu0 %v1126
          %1202 = vmatprep.subr.bf16.mxu0 0
          %1203 = vmatpush1.bf16.msra.mxu0 %v1127
          %1204 = vmatprep.subr.bf16.mxu0 0
          %1205 = vmatpush1.bf16.msra.mxu0 %v1128
          %1206 = vmatprep.subr.bf16.mxu0 0
          %1207 = vmatpush1.bf16.msra.mxu0 %v1129
          %1208 = vmatprep.subr.bf16.mxu0 0
          %1209 = vmatpush1.bf16.msra.mxu0 %v1130
          %1210 = vmatprep.subr.bf16.mxu0 0
          %1211 = vmatpush1.bf16.msra.mxu0 %v1131
          %1212 = vmatprep.mubr.bf16.mxu0 %v981
          %1213 = vmatmul.mubr.bf16.gmra.mrb[0].mxu0 %v980
          %v1214 = vpop.f32.mrb[0].mxu0
          %v1215 = vadd.f32 %v973, %v1214
          %v1216 = vpop.f32.mrb[0].mxu0
          %v1217 = vpop.f32.mrb[0].mxu0
          %v1218 = vpop.f32.mrb[0].mxu0
          %1219 = vdwg.mxu0
          %1220 = vmatprep.subr.bf16.mxu0 0
          %1221 = vmatpush1.bf16.msra.mxu0 %v1132
          %1222 = vmatprep.subr.bf16.mxu0 0
          %1223 = vmatpush1.bf16.msra.mxu0 %v1133
          %1224 = vmatprep.subr.bf16.mxu0 0
          %1225 = vmatpush1.bf16.msra.mxu0 %v1134
          %1226 = vmatprep.subr.bf16.mxu0 0
          %1227 = vmatpush1.bf16.msra.mxu0 %v1135
          %1228 = vmatprep.subr.bf16.mxu0 0
          %1229 = vmatpush1.bf16.msra.mxu0 %v1136
          %1230 = vmatprep.subr.bf16.mxu0 0
          %1231 = vmatpush1.bf16.msra.mxu0 %v1137
          %1232 = vmatprep.subr.bf16.mxu0 0
          %1233 = vmatpush1.bf16.msra.mxu0 %v1138
          %1234 = vmatprep.subr.bf16.mxu0 0
          %1235 = vmatpush1.bf16.msra.mxu0 %v1139
          %1236 = vmatprep.subr.bf16.mxu0 0
          %1237 = vmatpush1.bf16.msra.mxu0 %v1140
          %1238 = vmatprep.subr.bf16.mxu0 0
          %1239 = vmatpush1.bf16.msra.mxu0 %v1141
          %1240 = vmatprep.subr.bf16.mxu0 0
          %1241 = vmatpush1.bf16.msra.mxu0 %v1142
          %1242 = vmatprep.subr.bf16.mxu0 0
          %1243 = vmatpush1.bf16.msra.mxu0 %v1143
          %1244 = vmatprep.subr.bf16.mxu0 0
          %1245 = vmatpush1.bf16.msra.mxu0 %v1144
          %1246 = vmatprep.subr.bf16.mxu0 0
          %1247 = vmatpush1.bf16.msra.mxu0 %v1145
          %1248 = vmatprep.subr.bf16.mxu0 0
          %1249 = vmatpush1.bf16.msra.mxu0 %v1146
          %1250 = vmatprep.subr.bf16.mxu0 0
          %1251 = vmatpush1.bf16.msra.mxu0 %v1147
          %1252 = vmatprep.mubr.bf16.mxu0 %v983
          %1253 = vmatmul.mubr.bf16.gmra.mrb[0].mxu0 %v982
          %v1254 = vpop.f32.mrb[0].mxu0
          %v1255 = vadd.f32 %v1215, %v1254
          %v1256 = vpop.f32.mrb[0].mxu0
          %v1257 = vpop.f32.mrb[0].mxu0
          %v1258 = vpop.f32.mrb[0].mxu0
          %1259 = vdwg.mxu0
          %1260 = vst [vmem:[#allocation12] sm:$0xff] %v1255
        $region64: #{model_forward.1} parent=39 // pred_fallthru
          _
        %v1261 = vld [vmem:[%s268] sm:$0xff]
        %v1262 = vld [vmem:[%s268 + $0x8] sm:$0xff]
        %v1263 = vld [vmem:[%s268 + $0x10] sm:$0xff]
        %v1264 = vld [vmem:[%s268 + $0x18] sm:$0xff]
        %v1265 = vld [vmem:[%s268 + $0x20] sm:$0xff]
        %v1266 = vld [vmem:[%s268 + $0x28] sm:$0xff]
        %v1267 = vld [vmem:[%s268 + $0x30] sm:$0xff]
        %v1268 = vld [vmem:[%s268 + $0x38] sm:$0xff]
        %v1269 = vld [vmem:[%s268 + $0x40] sm:$0xff]
        %v1270 = vld [vmem:[%s268 + $0x48] sm:$0xff]
        %v1271 = vld [vmem:[%s268 + $0x50] sm:$0xff]
        %v1272 = vld [vmem:[%s268 + $0x58] sm:$0xff]
        %v1273 = vld [vmem:[%s268 + $0x60] sm:$0xff]
        %v1274 = vld [vmem:[%s268 + $0x68] sm:$0xff]
        %v1275 = vld [vmem:[%s268 + $0x70] sm:$0xff]
        %v1276 = vld [vmem:[%s268 + $0x78] sm:$0xff]
        %v1277 = vld [vmem:[%s268 + $0x80] sm:$0xff]
        %v1278 = vld [vmem:[%s268 + $0x88] sm:$0xff]
        %v1279 = vld [vmem:[%s268 + $0x90] sm:$0xff]
        %v1280 = vld [vmem:[%s268 + $0x98] sm:$0xff]
        %v1281 = vld [vmem:[%s268 + $0xa0] sm:$0xff]
        %v1282 = vld [vmem:[%s268 + $0xa8] sm:$0xff]
        %v1283 = vld [vmem:[%s268 + $0xb0] sm:$0xff]
        %v1284 = vld [vmem:[%s268 + $0xb8] sm:$0xff]
        %v1285 = vld [vmem:[%s268 + $0xc0] sm:$0xff]
        %v1286 = vld [vmem:[%s268 + $0xc8] sm:$0xff]
        %v1287 = vld [vmem:[%s268 + $0xd0] sm:$0xff]
        %v1288 = vld [vmem:[%s268 + $0xd8] sm:$0xff]
        %v1289 = vld [vmem:[%s268 + $0xe0] sm:$0xff]
        %v1290 = vld [vmem:[%s268 + $0xe8] sm:$0xff]
        %v1291 = vld [vmem:[%s268 + $0xf0] sm:$0xff]
        %v1292 = vld [vmem:[%s268 + $0xf8] sm:$0xff]
        %v1293 = vld [vmem:[%s268 + $0x100] sm:$0xff]
        %v1294 = vld [vmem:[%s268 + $0x108] sm:$0xff]
        %v1295 = vld [vmem:[%s268 + $0x110] sm:$0xff]
        %v1296 = vld [vmem:[%s268 + $0x118] sm:$0xff]
        %v1297 = vld [vmem:[%s268 + $0x120] sm:$0xff]
        %v1298 = vld [vmem:[%s268 + $0x128] sm:$0xff]
        %v1299 = vld [vmem:[%s268 + $0x130] sm:$0xff]
        %v1300 = vld [vmem:[%s268 + $0x138] sm:$0xff]
        %v1301 = vld [vmem:[%s268 + $0x140] sm:$0xff]
        %v1302 = vld [vmem:[%s268 + $0x148] sm:$0xff]
        %v1303 = vld [vmem:[%s268 + $0x150] sm:$0xff]
        %v1304 = vld [vmem:[%s268 + $0x158] sm:$0xff]
        %v1305 = vld [vmem:[%s268 + $0x160] sm:$0xff]
        %v1306 = vld [vmem:[%s268 + $0x168] sm:$0xff]
        %v1307 = vld [vmem:[%s268 + $0x170] sm:$0xff]
        %v1308 = vld [vmem:[%s268 + $0x178] sm:$0xff]
        %v1309 = vld [vmem:[%s268 + $0x180] sm:$0xff]
        %v1310 = vld [vmem:[%s268 + $0x188] sm:$0xff]
        %v1311 = vld [vmem:[%s268 + $0x190] sm:$0xff]
        %v1312 = vld [vmem:[%s268 + $0x198] sm:$0xff]
        %v1313 = vld [vmem:[%s268 + $0x1a0] sm:$0xff]
        %v1314 = vld [vmem:[%s268 + $0x1a8] sm:$0xff]
        %v1315 = vld [vmem:[%s268 + $0x1b0] sm:$0xff]
        %v1316 = vld [vmem:[%s268 + $0x1b8] sm:$0xff]
        %v1317 = vld [vmem:[%s268 + $0x1c0] sm:$0xff]
        %v1318 = vld [vmem:[%s268 + $0x1c8] sm:$0xff]
        %v1319 = vld [vmem:[%s268 + $0x1d0] sm:$0xff]
        %v1320 = vld [vmem:[%s268 + $0x1d8] sm:$0xff]
        %v1321 = vld [vmem:[%s268 + $0x1e0] sm:$0xff]
        %v1322 = vld [vmem:[%s268 + $0x1e8] sm:$0xff]
        %v1323 = vld [vmem:[%s268 + $0x1f0] sm:$0xff]
        %v1324 = vld [vmem:[%s268 + $0x1f8] sm:$0xff]
        %v1325 = vld [vmem:[%s268 + $0x200] sm:$0xff]
        %v1326 = vld [vmem:[%s268 + $0x208] sm:$0xff]
        %v1327 = vld [vmem:[%s268 + $0x210] sm:$0xff]
        %v1328 = vld [vmem:[%s268 + $0x218] sm:$0xff]
        %v1329 = vld [vmem:[%s268 + $0x220] sm:$0xff]
        %v1330 = vld [vmem:[%s268 + $0x228] sm:$0xff]
        %v1331 = vld [vmem:[%s268 + $0x230] sm:$0xff]
        %v1332 = vld [vmem:[%s268 + $0x238] sm:$0xff]
        %v1333 = vld [vmem:[%s268 + $0x240] sm:$0xff]
        %v1334 = vld [vmem:[%s268 + $0x248] sm:$0xff]
        %v1335 = vld [vmem:[%s268 + $0x250] sm:$0xff]
        %v1336 = vld [vmem:[%s268 + $0x258] sm:$0xff]
        %v1337 = vld [vmem:[%s268 + $0x260] sm:$0xff]
        %v1338 = vld [vmem:[%s268 + $0x268] sm:$0xff]
        %v1339 = vld [vmem:[%s268 + $0x270] sm:$0xff]
        %v1340 = vld [vmem:[%s268 + $0x278] sm:$0xff]
        %v1341 = vld [vmem:[%s268 + $0x280] sm:$0xff]
        %v1342 = vld [vmem:[%s268 + $0x288] sm:$0xff]
        %v1343 = vld [vmem:[%s268 + $0x290] sm:$0xff]
        %v1344 = vld [vmem:[%s268 + $0x298] sm:$0xff]
        %v1345 = vld [vmem:[%s268 + $0x2a0] sm:$0xff]
        %v1346 = vld [vmem:[%s268 + $0x2a8] sm:$0xff]
        %v1347 = vld [vmem:[%s268 + $0x2b0] sm:$0xff]
        %v1348 = vld [vmem:[%s268 + $0x2b8] sm:$0xff]
        %v1349 = vld [vmem:[%s268 + $0x2c0] sm:$0xff]
        %v1350 = vld [vmem:[%s268 + $0x2c8] sm:$0xff]
        %v1351 = vld [vmem:[%s268 + $0x2d0] sm:$0xff]
        %v1352 = vld [vmem:[%s268 + $0x2d8] sm:$0xff]
        %v1353 = vld [vmem:[%s268 + $0x2e0] sm:$0xff]
        %v1354 = vld [vmem:[%s268 + $0x2e8] sm:$0xff]
        %v1355 = vld [vmem:[%s268 + $0x2f0] sm:$0xff]
        %v1356 = vld [vmem:[%s268 + $0x2f8] sm:$0xff]
        %v1357 = vld [vmem:[%s268 + $0x300] sm:$0xff]
        %v1358 = vld [vmem:[%s268 + $0x308] sm:$0xff]
        %v1359 = vld [vmem:[%s268 + $0x310] sm:$0xff]
        %v1360 = vld [vmem:[%s268 + $0x318] sm:$0xff]
        %v1361 = vld [vmem:[%s268 + $0x320] sm:$0xff]
        %v1362 = vld [vmem:[%s268 + $0x328] sm:$0xff]
        %v1363 = vld [vmem:[%s268 + $0x330] sm:$0xff]
        %v1364 = vld [vmem:[%s268 + $0x338] sm:$0xff]
        %v1365 = vld [vmem:[%s268 + $0x340] sm:$0xff]
        %v1366 = vld [vmem:[%s268 + $0x348] sm:$0xff]
        %v1367 = vld [vmem:[%s268 + $0x350] sm:$0xff]
        %v1368 = vld [vmem:[%s268 + $0x358] sm:$0xff]
        %v1369 = vld [vmem:[%s268 + $0x360] sm:$0xff]
        %v1370 = vld [vmem:[%s268 + $0x368] sm:$0xff]
        %v1371 = vld [vmem:[%s268 + $0x370] sm:$0xff]
        %v1372 = vld [vmem:[%s268 + $0x378] sm:$0xff]
        %v1373 = vld [vmem:[%s268 + $0x380] sm:$0xff]
        %v1374 = vld [vmem:[%s268 + $0x388] sm:$0xff]
        %v1375 = vld [vmem:[%s268 + $0x390] sm:$0xff]
        %v1376 = vld [vmem:[%s268 + $0x398] sm:$0xff]
        %v1377 = vld [vmem:[%s268 + $0x3a0] sm:$0xff]
        %v1378 = vld [vmem:[%s268 + $0x3a8] sm:$0xff]
        %v1379 = vld [vmem:[%s268 + $0x3b0] sm:$0xff]
        %v1380 = vld [vmem:[%s268 + $0x3b8] sm:$0xff]
        %v1381 = vld [vmem:[%s268 + $0x3c0] sm:$0xff]
        %v1382 = vld [vmem:[%s268 + $0x3c8] sm:$0xff]
        %v1383 = vld [vmem:[%s268 + $0x3d0] sm:$0xff]
        %v1384 = vld [vmem:[%s268 + $0x3d8] sm:$0xff]
        %v1385 = vld [vmem:[%s268 + $0x3e0] sm:$0xff]
        %v1386 = vld [vmem:[%s268 + $0x3e8] sm:$0xff]
        %v1387 = vld [vmem:[%s268 + $0x3f0] sm:$0xff]
        %v1388 = vld [vmem:[%s268 + $0x3f8] sm:$0xff]
        %s1389 = sadd.s32 %s24, 1
        %s1390 = sshra.s32 %s1389, 3
        %s1391 = sand.u32 %s1389, 7
        %s1392 = sshra.s32 %s1389, 3
        %s1393 = sand.u32 %s1389, 7
        %s1394 = smul.u32 %s1390, 4
        %s1395 = smul.u32 %s1394, 8
        %s1396 = sadd.s32 %s1395, %s1393
        %s1397 = scalar_lea.vmem [#allocation10], %s1396
        %v1398 = vld [vmem:[%s1397] ss:$8 sm:$0xf]
        %v1400 = vlaneseq
        %v1401 = vshrl.u32 %v1400, 7
        %v1402 = vsub.s32 0, %v1401
        %v1403 = vrot.slane %v1398, %v1402
        %v1404 = vlaneseq
        %v1405 = vshrl.u32 %v1404, 7
        %v1406 = vsub.s32 1, %v1405
        %v1407 = vrot.slane %v1398, %v1406
        %v1408 = vlaneseq
        %v1409 = vshrl.u32 %v1408, 7
        %v1410 = vsub.s32 2, %v1409
        %v1411 = vrot.slane %v1398, %v1410
        %v1412 = vlaneseq
        %v1413 = vshrl.u32 %v1412, 7
        %v1414 = vsub.s32 3, %v1413
        %v1415 = vrot.slane %v1398, %v1414
        %v1422 = vunpack.c.l.b16 %v903
        %v1423 = vunpack.c.h.b16 %v903
        %v1424 = vunpack.c.l.b16 %v904
        %v1425 = vunpack.c.h.b16 %v904
        %v1426 = vpack.c.b16 %v1422, %v1422
        %v1427 = vpack.c.b16 %v1423, %v1423
        %v1428 = vpack.c.b16 %v1424, %v1424
        %v1429 = vpack.c.b16 %v1425, %v1425
        %v1562 = vunpack.c.l.b16 %v1261
        %v1563 = vunpack.c.h.b16 %v1261
        %v1564 = vunpack.c.l.b16 %v1262
        %v1565 = vunpack.c.h.b16 %v1262
        %v1566 = vunpack.c.l.b16 %v1263
        %v1567 = vunpack.c.h.b16 %v1263
        %v1568 = vunpack.c.l.b16 %v1264
        %v1569 = vunpack.c.h.b16 %v1264
        %v1570 = vunpack.c.l.b16 %v1265
        %v1571 = vunpack.c.h.b16 %v1265
        %v1572 = vunpack.c.l.b16 %v1266
        %v1573 = vunpack.c.h.b16 %v1266
        %v1574 = vunpack.c.l.b16 %v1267
        %v1575 = vunpack.c.h.b16 %v1267
        %v1576 = vunpack.c.l.b16 %v1268
        %v1577 = vunpack.c.h.b16 %v1268
        %v1578 = vunpack.c.l.b16 %v1269
        %v1579 = vunpack.c.h.b16 %v1269
        %v1580 = vunpack.c.l.b16 %v1270
        %v1581 = vunpack.c.h.b16 %v1270
        %v1582 = vunpack.c.l.b16 %v1271
        %v1583 = vunpack.c.h.b16 %v1271
        %v1584 = vunpack.c.l.b16 %v1272
        %v1585 = vunpack.c.h.b16 %v1272
        %v1586 = vunpack.c.l.b16 %v1273
        %v1587 = vunpack.c.h.b16 %v1273
        %v1588 = vunpack.c.l.b16 %v1274
        %v1589 = vunpack.c.h.b16 %v1274
        %v1590 = vunpack.c.l.b16 %v1275
        %v1591 = vunpack.c.h.b16 %v1275
        %v1592 = vunpack.c.l.b16 %v1276
        %v1593 = vunpack.c.h.b16 %v1276
        %v1594 = vunpack.c.l.b16 %v1277
        %v1595 = vunpack.c.h.b16 %v1277
        %v1596 = vunpack.c.l.b16 %v1278
        %v1597 = vunpack.c.h.b16 %v1278
        %v1598 = vunpack.c.l.b16 %v1279
        %v1599 = vunpack.c.h.b16 %v1279
        %v1600 = vunpack.c.l.b16 %v1280
        %v1601 = vunpack.c.h.b16 %v1280
        %v1602 = vunpack.c.l.b16 %v1281
        %v1603 = vunpack.c.h.b16 %v1281
        %v1604 = vunpack.c.l.b16 %v1282
        %v1605 = vunpack.c.h.b16 %v1282
        %v1606 = vunpack.c.l.b16 %v1283
        %v1607 = vunpack.c.h.b16 %v1283
        %v1608 = vunpack.c.l.b16 %v1284
        %v1609 = vunpack.c.h.b16 %v1284
        %v1610 = vunpack.c.l.b16 %v1285
        %v1611 = vunpack.c.h.b16 %v1285
        %v1612 = vunpack.c.l.b16 %v1286
        %v1613 = vunpack.c.h.b16 %v1286
        %v1614 = vunpack.c.l.b16 %v1287
        %v1615 = vunpack.c.h.b16 %v1287
        %v1616 = vunpack.c.l.b16 %v1288
        %v1617 = vunpack.c.h.b16 %v1288
        %v1618 = vunpack.c.l.b16 %v1289
        %v1619 = vunpack.c.h.b16 %v1289
        %v1620 = vunpack.c.l.b16 %v1290
        %v1621 = vunpack.c.h.b16 %v1290
        %v1622 = vunpack.c.l.b16 %v1291
        %v1623 = vunpack.c.h.b16 %v1291
        %v1624 = vunpack.c.l.b16 %v1292
        %v1625 = vunpack.c.h.b16 %v1292
        %v1626 = vunpack.c.l.b16 %v1293
        %v1627 = vunpack.c.h.b16 %v1293
        %v1628 = vunpack.c.l.b16 %v1294
        %v1629 = vunpack.c.h.b16 %v1294
        %v1630 = vunpack.c.l.b16 %v1295
        %v1631 = vunpack.c.h.b16 %v1295
        %v1632 = vunpack.c.l.b16 %v1296
        %v1633 = vunpack.c.h.b16 %v1296
        %v1634 = vunpack.c.l.b16 %v1297
        %v1635 = vunpack.c.h.b16 %v1297
        %v1636 = vunpack.c.l.b16 %v1298
        %v1637 = vunpack.c.h.b16 %v1298
        %v1638 = vunpack.c.l.b16 %v1299
        %v1639 = vunpack.c.h.b16 %v1299
        %v1640 = vunpack.c.l.b16 %v1300
        %v1641 = vunpack.c.h.b16 %v1300
        %v1642 = vunpack.c.l.b16 %v1301
        %v1643 = vunpack.c.h.b16 %v1301
        %v1644 = vunpack.c.l.b16 %v1302
        %v1645 = vunpack.c.h.b16 %v1302
        %v1646 = vunpack.c.l.b16 %v1303
        %v1647 = vunpack.c.h.b16 %v1303
        %v1648 = vunpack.c.l.b16 %v1304
        %v1649 = vunpack.c.h.b16 %v1304
        %v1650 = vunpack.c.l.b16 %v1305
        %v1651 = vunpack.c.h.b16 %v1305
        %v1652 = vunpack.c.l.b16 %v1306
        %v1653 = vunpack.c.h.b16 %v1306
        %v1654 = vunpack.c.l.b16 %v1307
        %v1655 = vunpack.c.h.b16 %v1307
        %v1656 = vunpack.c.l.b16 %v1308
        %v1657 = vunpack.c.h.b16 %v1308
        %v1658 = vunpack.c.l.b16 %v1309
        %v1659 = vunpack.c.h.b16 %v1309
        %v1660 = vunpack.c.l.b16 %v1310
        %v1661 = vunpack.c.h.b16 %v1310
        %v1662 = vunpack.c.l.b16 %v1311
        %v1663 = vunpack.c.h.b16 %v1311
        %v1664 = vunpack.c.l.b16 %v1312
        %v1665 = vunpack.c.h.b16 %v1312
        %v1666 = vunpack.c.l.b16 %v1313
        %v1667 = vunpack.c.h.b16 %v1313
        %v1668 = vunpack.c.l.b16 %v1314
        %v1669 = vunpack.c.h.b16 %v1314
        %v1670 = vunpack.c.l.b16 %v1315
        %v1671 = vunpack.c.h.b16 %v1315
        %v1672 = vunpack.c.l.b16 %v1316
        %v1673 = vunpack.c.h.b16 %v1316
        %v1674 = vunpack.c.l.b16 %v1317
        %v1675 = vunpack.c.h.b16 %v1317
        %v1676 = vunpack.c.l.b16 %v1318
        %v1677 = vunpack.c.h.b16 %v1318
        %v1678 = vunpack.c.l.b16 %v1319
        %v1679 = vunpack.c.h.b16 %v1319
        %v1680 = vunpack.c.l.b16 %v1320
        %v1681 = vunpack.c.h.b16 %v1320
        %v1682 = vunpack.c.l.b16 %v1321
        %v1683 = vunpack.c.h.b16 %v1321
        %v1684 = vunpack.c.l.b16 %v1322
        %v1685 = vunpack.c.h.b16 %v1322
        %v1686 = vunpack.c.l.b16 %v1323
        %v1687 = vunpack.c.h.b16 %v1323
        %v1688 = vunpack.c.l.b16 %v1324
        %v1689 = vunpack.c.h.b16 %v1324
        %v1690 = vunpack.c.l.b16 %v1325
        %v1691 = vunpack.c.h.b16 %v1325
        %v1692 = vunpack.c.l.b16 %v1326
        %v1693 = vunpack.c.h.b16 %v1326
        %v1694 = vunpack.c.l.b16 %v1327
        %v1695 = vunpack.c.h.b16 %v1327
        %v1696 = vunpack.c.l.b16 %v1328
        %v1697 = vunpack.c.h.b16 %v1328
        %v1698 = vunpack.c.l.b16 %v1329
        %v1699 = vunpack.c.h.b16 %v1329
        %v1700 = vunpack.c.l.b16 %v1330
        %v1701 = vunpack.c.h.b16 %v1330
        %v1702 = vunpack.c.l.b16 %v1331
        %v1703 = vunpack.c.h.b16 %v1331
        %v1704 = vunpack.c.l.b16 %v1332
        %v1705 = vunpack.c.h.b16 %v1332
        %v1706 = vunpack.c.l.b16 %v1333
        %v1707 = vunpack.c.h.b16 %v1333
        %v1708 = vunpack.c.l.b16 %v1334
        %v1709 = vunpack.c.h.b16 %v1334
        %v1710 = vunpack.c.l.b16 %v1335
        %v1711 = vunpack.c.h.b16 %v1335
        %v1712 = vunpack.c.l.b16 %v1336
        %v1713 = vunpack.c.h.b16 %v1336
        %v1714 = vunpack.c.l.b16 %v1337
        %v1715 = vunpack.c.h.b16 %v1337
        %v1716 = vunpack.c.l.b16 %v1338
        %v1717 = vunpack.c.h.b16 %v1338
        %v1718 = vunpack.c.l.b16 %v1339
        %v1719 = vunpack.c.h.b16 %v1339
        %v1720 = vunpack.c.l.b16 %v1340
        %v1721 = vunpack.c.h.b16 %v1340
        %v1722 = vunpack.c.l.b16 %v1341
        %v1723 = vunpack.c.h.b16 %v1341
        %v1724 = vunpack.c.l.b16 %v1342
        %v1725 = vunpack.c.h.b16 %v1342
        %v1726 = vunpack.c.l.b16 %v1343
        %v1727 = vunpack.c.h.b16 %v1343
        %v1728 = vunpack.c.l.b16 %v1344
        %v1729 = vunpack.c.h.b16 %v1344
        %v1730 = vunpack.c.l.b16 %v1345
        %v1731 = vunpack.c.h.b16 %v1345
        %v1732 = vunpack.c.l.b16 %v1346
        %v1733 = vunpack.c.h.b16 %v1346
        %v1734 = vunpack.c.l.b16 %v1347
        %v1735 = vunpack.c.h.b16 %v1347
        %v1736 = vunpack.c.l.b16 %v1348
        %v1737 = vunpack.c.h.b16 %v1348
        %v1738 = vunpack.c.l.b16 %v1349
        %v1739 = vunpack.c.h.b16 %v1349
        %v1740 = vunpack.c.l.b16 %v1350
        %v1741 = vunpack.c.h.b16 %v1350
        %v1742 = vunpack.c.l.b16 %v1351
        %v1743 = vunpack.c.h.b16 %v1351
        %v1744 = vunpack.c.l.b16 %v1352
        %v1745 = vunpack.c.h.b16 %v1352
        %v1746 = vunpack.c.l.b16 %v1353
        %v1747 = vunpack.c.h.b16 %v1353
        %v1748 = vunpack.c.l.b16 %v1354
        %v1749 = vunpack.c.h.b16 %v1354
        %v1750 = vunpack.c.l.b16 %v1355
        %v1751 = vunpack.c.h.b16 %v1355
        %v1752 = vunpack.c.l.b16 %v1356
        %v1753 = vunpack.c.h.b16 %v1356
        %v1754 = vunpack.c.l.b16 %v1357
        %v1755 = vunpack.c.h.b16 %v1357
        %v1756 = vunpack.c.l.b16 %v1358
        %v1757 = vunpack.c.h.b16 %v1358
        %v1758 = vunpack.c.l.b16 %v1359
        %v1759 = vunpack.c.h.b16 %v1359
        %v1760 = vunpack.c.l.b16 %v1360
        %v1761 = vunpack.c.h.b16 %v1360
        %v1762 = vunpack.c.l.b16 %v1361
        %v1763 = vunpack.c.h.b16 %v1361
        %v1764 = vunpack.c.l.b16 %v1362
        %v1765 = vunpack.c.h.b16 %v1362
        %v1766 = vunpack.c.l.b16 %v1363
        %v1767 = vunpack.c.h.b16 %v1363
        %v1768 = vunpack.c.l.b16 %v1364
        %v1769 = vunpack.c.h.b16 %v1364
        %v1770 = vunpack.c.l.b16 %v1365
        %v1771 = vunpack.c.h.b16 %v1365
        %v1772 = vunpack.c.l.b16 %v1366
        %v1773 = vunpack.c.h.b16 %v1366
        %v1774 = vunpack.c.l.b16 %v1367
        %v1775 = vunpack.c.h.b16 %v1367
        %v1776 = vunpack.c.l.b16 %v1368
        %v1777 = vunpack.c.h.b16 %v1368
        %v1778 = vunpack.c.l.b16 %v1369
        %v1779 = vunpack.c.h.b16 %v1369
        %v1780 = vunpack.c.l.b16 %v1370
        %v1781 = vunpack.c.h.b16 %v1370
        %v1782 = vunpack.c.l.b16 %v1371
        %v1783 = vunpack.c.h.b16 %v1371
        %v1784 = vunpack.c.l.b16 %v1372
        %v1785 = vunpack.c.h.b16 %v1372
        %v1786 = vunpack.c.l.b16 %v1373
        %v1787 = vunpack.c.h.b16 %v1373
        %v1788 = vunpack.c.l.b16 %v1374
        %v1789 = vunpack.c.h.b16 %v1374
        %v1790 = vunpack.c.l.b16 %v1375
        %v1791 = vunpack.c.h.b16 %v1375
        %v1792 = vunpack.c.l.b16 %v1376
        %v1793 = vunpack.c.h.b16 %v1376
        %v1794 = vunpack.c.l.b16 %v1377
        %v1795 = vunpack.c.h.b16 %v1377
        %v1796 = vunpack.c.l.b16 %v1378
        %v1797 = vunpack.c.h.b16 %v1378
        %v1798 = vunpack.c.l.b16 %v1379
        %v1799 = vunpack.c.h.b16 %v1379
        %v1800 = vunpack.c.l.b16 %v1380
        %v1801 = vunpack.c.h.b16 %v1380
        %v1802 = vunpack.c.l.b16 %v1381
        %v1803 = vunpack.c.h.b16 %v1381
        %v1804 = vunpack.c.l.b16 %v1382
        %v1805 = vunpack.c.h.b16 %v1382
        %v1806 = vunpack.c.l.b16 %v1383
        %v1807 = vunpack.c.h.b16 %v1383
        %v1808 = vunpack.c.l.b16 %v1384
        %v1809 = vunpack.c.h.b16 %v1384
        %v1810 = vunpack.c.l.b16 %v1385
        %v1811 = vunpack.c.h.b16 %v1385
        %v1812 = vunpack.c.l.b16 %v1386
        %v1813 = vunpack.c.h.b16 %v1386
        %v1814 = vunpack.c.l.b16 %v1387
        %v1815 = vunpack.c.h.b16 %v1387
        %v1816 = vunpack.c.l.b16 %v1388
        %v1817 = vunpack.c.h.b16 %v1388
        %v1818 = vpack.c.b16 %v1566, %v1562
        %v1819 = vpack.c.b16 %v1567, %v1563
        %v1820 = vpack.c.b16 %v1568, %v1564
        %v1821 = vpack.c.b16 %v1569, %v1565
        %v1822 = vpack.c.b16 %v1574, %v1570
        %v1823 = vpack.c.b16 %v1575, %v1571
        %v1824 = vpack.c.b16 %v1576, %v1572
        %v1825 = vpack.c.b16 %v1577, %v1573
        %v1826 = vpack.c.b16 %v1582, %v1578
        %v1827 = vpack.c.b16 %v1583, %v1579
        %v1828 = vpack.c.b16 %v1584, %v1580
        %v1829 = vpack.c.b16 %v1585, %v1581
        %v1830 = vpack.c.b16 %v1590, %v1586
        %v1831 = vpack.c.b16 %v1591, %v1587
        %v1832 = vpack.c.b16 %v1592, %v1588
        %v1833 = vpack.c.b16 %v1593, %v1589
        %v1834 = vpack.c.b16 %v1598, %v1594
        %v1835 = vpack.c.b16 %v1599, %v1595
        %v1836 = vpack.c.b16 %v1600, %v1596
        %v1837 = vpack.c.b16 %v1601, %v1597
        %v1838 = vpack.c.b16 %v1606, %v1602
        %v1839 = vpack.c.b16 %v1607, %v1603
        %v1840 = vpack.c.b16 %v1608, %v1604
        %v1841 = vpack.c.b16 %v1609, %v1605
        %v1842 = vpack.c.b16 %v1614, %v1610
        %v1843 = vpack.c.b16 %v1615, %v1611
        %v1844 = vpack.c.b16 %v1616, %v1612
        %v1845 = vpack.c.b16 %v1617, %v1613
        %v1846 = vpack.c.b16 %v1622, %v1618
        %v1847 = vpack.c.b16 %v1623, %v1619
        %v1848 = vpack.c.b16 %v1624, %v1620
        %v1849 = vpack.c.b16 %v1625, %v1621
        %v1850 = vpack.c.b16 %v1630, %v1626
        %v1851 = vpack.c.b16 %v1631, %v1627
        %v1852 = vpack.c.b16 %v1632, %v1628
        %v1853 = vpack.c.b16 %v1633, %v1629
        %v1854 = vpack.c.b16 %v1638, %v1634
        %v1855 = vpack.c.b16 %v1639, %v1635
        %v1856 = vpack.c.b16 %v1640, %v1636
        %v1857 = vpack.c.b16 %v1641, %v1637
        %v1858 = vpack.c.b16 %v1646, %v1642
        %v1859 = vpack.c.b16 %v1647, %v1643
        %v1860 = vpack.c.b16 %v1648, %v1644
        %v1861 = vpack.c.b16 %v1649, %v1645
        %v1862 = vpack.c.b16 %v1654, %v1650
        %v1863 = vpack.c.b16 %v1655, %v1651
        %v1864 = vpack.c.b16 %v1656, %v1652
        %v1865 = vpack.c.b16 %v1657, %v1653
        %v1866 = vpack.c.b16 %v1662, %v1658
        %v1867 = vpack.c.b16 %v1663, %v1659
        %v1868 = vpack.c.b16 %v1664, %v1660
        %v1869 = vpack.c.b16 %v1665, %v1661
        %v1870 = vpack.c.b16 %v1670, %v1666
        %v1871 = vpack.c.b16 %v1671, %v1667
        %v1872 = vpack.c.b16 %v1672, %v1668
        %v1873 = vpack.c.b16 %v1673, %v1669
        %v1874 = vpack.c.b16 %v1678, %v1674
        %v1875 = vpack.c.b16 %v1679, %v1675
        %v1876 = vpack.c.b16 %v1680, %v1676
        %v1877 = vpack.c.b16 %v1681, %v1677
        %v1878 = vpack.c.b16 %v1686, %v1682
        %v1879 = vpack.c.b16 %v1687, %v1683
        %v1880 = vpack.c.b16 %v1688, %v1684
        %v1881 = vpack.c.b16 %v1689, %v1685
        %v1882 = vpack.c.b16 %v1694, %v1690
        %v1883 = vpack.c.b16 %v1695, %v1691
        %v1884 = vpack.c.b16 %v1696, %v1692
        %v1885 = vpack.c.b16 %v1697, %v1693
        %v1886 = vpack.c.b16 %v1702, %v1698
        %v1887 = vpack.c.b16 %v1703, %v1699
        %v1888 = vpack.c.b16 %v1704, %v1700
        %v1889 = vpack.c.b16 %v1705, %v1701
        %v1890 = vpack.c.b16 %v1710, %v1706
        %v1891 = vpack.c.b16 %v1711, %v1707
        %v1892 = vpack.c.b16 %v1712, %v1708
        %v1893 = vpack.c.b16 %v1713, %v1709
        %v1894 = vpack.c.b16 %v1718, %v1714
        %v1895 = vpack.c.b16 %v1719, %v1715
        %v1896 = vpack.c.b16 %v1720, %v1716
        %v1897 = vpack.c.b16 %v1721, %v1717
        %v1898 = vpack.c.b16 %v1726, %v1722
        %v1899 = vpack.c.b16 %v1727, %v1723
        %v1900 = vpack.c.b16 %v1728, %v1724
        %v1901 = vpack.c.b16 %v1729, %v1725
        %v1902 = vpack.c.b16 %v1734, %v1730
        %v1903 = vpack.c.b16 %v1735, %v1731
        %v1904 = vpack.c.b16 %v1736, %v1732
        %v1905 = vpack.c.b16 %v1737, %v1733
        %v1906 = vpack.c.b16 %v1742, %v1738
        %v1907 = vpack.c.b16 %v1743, %v1739
        %v1908 = vpack.c.b16 %v1744, %v1740
        %v1909 = vpack.c.b16 %v1745, %v1741
        %v1910 = vpack.c.b16 %v1750, %v1746
        %v1911 = vpack.c.b16 %v1751, %v1747
        %v1912 = vpack.c.b16 %v1752, %v1748
        %v1913 = vpack.c.b16 %v1753, %v1749
        %v1914 = vpack.c.b16 %v1758, %v1754
        %v1915 = vpack.c.b16 %v1759, %v1755
        %v1916 = vpack.c.b16 %v1760, %v1756
        %v1917 = vpack.c.b16 %v1761, %v1757
        %v1918 = vpack.c.b16 %v1766, %v1762
        %v1919 = vpack.c.b16 %v1767, %v1763
        %v1920 = vpack.c.b16 %v1768, %v1764
        %v1921 = vpack.c.b16 %v1769, %v1765
        %v1922 = vpack.c.b16 %v1774, %v1770
        %v1923 = vpack.c.b16 %v1775, %v1771
        %v1924 = vpack.c.b16 %v1776, %v1772
        %v1925 = vpack.c.b16 %v1777, %v1773
        %v1926 = vpack.c.b16 %v1782, %v1778
        %v1927 = vpack.c.b16 %v1783, %v1779
        %v1928 = vpack.c.b16 %v1784, %v1780
        %v1929 = vpack.c.b16 %v1785, %v1781
        %v1930 = vpack.c.b16 %v1790, %v1786
        %v1931 = vpack.c.b16 %v1791, %v1787
        %v1932 = vpack.c.b16 %v1792, %v1788
        %v1933 = vpack.c.b16 %v1793, %v1789
        %v1934 = vpack.c.b16 %v1798, %v1794
        %v1935 = vpack.c.b16 %v1799, %v1795
        %v1936 = vpack.c.b16 %v1800, %v1796
        %v1937 = vpack.c.b16 %v1801, %v1797
        %v1938 = vpack.c.b16 %v1806, %v1802
        %v1939 = vpack.c.b16 %v1807, %v1803
        %v1940 = vpack.c.b16 %v1808, %v1804
        %v1941 = vpack.c.b16 %v1809, %v1805
        %v1942 = vpack.c.b16 %v1814, %v1810
        %v1943 = vpack.c.b16 %v1815, %v1811
        %v1944 = vpack.c.b16 %v1816, %v1812
        %v1945 = vpack.c.b16 %v1817, %v1813
        %2074 = vmatprep.subr.bf16.mxu0 %v1819
        %2075 = vmatpush1.bf16.msra.mxu0 %v1818
        %2076 = vmatprep.subr.bf16.mxu0 %v1823
        %2077 = vmatpush1.bf16.msra.mxu0 %v1822
        %2078 = vmatprep.subr.bf16.mxu0 %v1827
        %2079 = vmatpush1.bf16.msra.mxu0 %v1826
        %2080 = vmatprep.subr.bf16.mxu0 %v1831
        %2081 = vmatpush1.bf16.msra.mxu0 %v1830
        %2082 = vmatprep.subr.bf16.mxu0 %v1835
        %2083 = vmatpush1.bf16.msra.mxu0 %v1834
        %2084 = vmatprep.subr.bf16.mxu0 %v1839
        %2085 = vmatpush1.bf16.msra.mxu0 %v1838
        %2086 = vmatprep.subr.bf16.mxu0 %v1843
        %2087 = vmatpush1.bf16.msra.mxu0 %v1842
        %2088 = vmatprep.subr.bf16.mxu0 %v1847
        %2089 = vmatpush1.bf16.msra.mxu0 %v1846
        %2090 = vmatprep.subr.bf16.mxu0 %v1851
        %2091 = vmatpush1.bf16.msra.mxu0 %v1850
        %2092 = vmatprep.subr.bf16.mxu0 %v1855
        %2093 = vmatpush1.bf16.msra.mxu0 %v1854
        %2094 = vmatprep.subr.bf16.mxu0 %v1859
        %2095 = vmatpush1.bf16.msra.mxu0 %v1858
        %2096 = vmatprep.subr.bf16.mxu0 %v1863
        %2097 = vmatpush1.bf16.msra.mxu0 %v1862
        %2098 = vmatprep.subr.bf16.mxu0 %v1867
        %2099 = vmatpush1.bf16.msra.mxu0 %v1866
        %2100 = vmatprep.subr.bf16.mxu0 %v1871
        %2101 = vmatpush1.bf16.msra.mxu0 %v1870
        %2102 = vmatprep.subr.bf16.mxu0 %v1875
        %2103 = vmatpush1.bf16.msra.mxu0 %v1874
        %2104 = vmatprep.subr.bf16.mxu0 %v1879
        %2105 = vmatpush1.bf16.msra.mxu0 %v1878
        %2106 = vmatprep.mubr.bf16.mxu0 %v1427
        %2107 = vmatmul.mubr.bf16.gmra.mrb[0].mxu0 %v1426
        %v2108 = vpop.f32.mrb[0].mxu0
        %v2109 = vadd.f32 %v1403, %v2108
        %v2110 = vpop.f32.mrb[0].mxu0
        %v2111 = vadd.f32 %v1407, %v2110
        %v2112 = vpop.f32.mrb[0].mxu0
        %v2113 = vpop.f32.mrb[0].mxu0
        %2114 = vdwg.mxu0
        %2115 = vmatprep.subr.bf16.mxu0 %v1883
        %2116 = vmatpush1.bf16.msra.mxu0 %v1882
        %2117 = vmatprep.subr.bf16.mxu0 %v1887
        %2118 = vmatpush1.bf16.msra.mxu0 %v1886
        %2119 = vmatprep.subr.bf16.mxu0 %v1891
        %2120 = vmatpush1.bf16.msra.mxu0 %v1890
        %2121 = vmatprep.subr.bf16.mxu0 %v1895
        %2122 = vmatpush1.bf16.msra.mxu0 %v1894
        %2123 = vmatprep.subr.bf16.mxu0 %v1899
        %2124 = vmatpush1.bf16.msra.mxu0 %v1898
        %2125 = vmatprep.subr.bf16.mxu0 %v1903
        %2126 = vmatpush1.bf16.msra.mxu0 %v1902
        %2127 = vmatprep.subr.bf16.mxu0 %v1907
        %2128 = vmatpush1.bf16.msra.mxu0 %v1906
        %2129 = vmatprep.subr.bf16.mxu0 %v1911
        %2130 = vmatpush1.bf16.msra.mxu0 %v1910
        %2131 = vmatprep.subr.bf16.mxu0 %v1915
        %2132 = vmatpush1.bf16.msra.mxu0 %v1914
        %2133 = vmatprep.subr.bf16.mxu0 %v1919
        %2134 = vmatpush1.bf16.msra.mxu0 %v1918
        %2135 = vmatprep.subr.bf16.mxu0 %v1923
        %2136 = vmatpush1.bf16.msra.mxu0 %v1922
        %2137 = vmatprep.subr.bf16.mxu0 %v1927
        %2138 = vmatpush1.bf16.msra.mxu0 %v1926
        %2139 = vmatprep.subr.bf16.mxu0 %v1931
        %2140 = vmatpush1.bf16.msra.mxu0 %v1930
        %2141 = vmatprep.subr.bf16.mxu0 %v1935
        %2142 = vmatpush1.bf16.msra.mxu0 %v1934
        %2143 = vmatprep.subr.bf16.mxu0 %v1939
        %2144 = vmatpush1.bf16.msra.mxu0 %v1938
        %2145 = vmatprep.subr.bf16.mxu0 %v1943
        %2146 = vmatpush1.bf16.msra.mxu0 %v1942
        %2147 = vmatprep.mubr.bf16.mxu0 %v1429
        %2148 = vmatmul.mubr.bf16.gmra.mrb[0].mxu0 %v1428
        %v2149 = vpop.f32.mrb[0].mxu0
        %v2150 = vadd.f32 %v2109, %v2149
        %v2151 = vpop.f32.mrb[0].mxu0
        %v2152 = vadd.f32 %v2111, %v2151
        %v2153 = vpop.f32.mrb[0].mxu0
        %v2154 = vpop.f32.mrb[0].mxu0
        %2155 = vdwg.mxu0
        %2156 = vmatprep.subr.bf16.mxu0 %v1821
        %2157 = vmatpush1.bf16.msra.mxu0 %v1820
        %2158 = vmatprep.subr.bf16.mxu0 %v1825
        %2159 = vmatpush1.bf16.msra.mxu0 %v1824
        %2160 = vmatprep.subr.bf16.mxu0 %v1829
        %2161 = vmatpush1.bf16.msra.mxu0 %v1828
        %2162 = vmatprep.subr.bf16.mxu0 %v1833
        %2163 = vmatpush1.bf16.msra.mxu0 %v1832
        %2164 = vmatprep.subr.bf16.mxu0 %v1837
        %2165 = vmatpush1.bf16.msra.mxu0 %v1836
        %2166 = vmatprep.subr.bf16.mxu0 %v1841
        %2167 = vmatpush1.bf16.msra.mxu0 %v1840
        %2168 = vmatprep.subr.bf16.mxu0 %v1845
        %2169 = vmatpush1.bf16.msra.mxu0 %v1844
        %2170 = vmatprep.subr.bf16.mxu0 %v1849
        %2171 = vmatpush1.bf16.msra.mxu0 %v1848
        %2172 = vmatprep.subr.bf16.mxu0 %v1853
        %2173 = vmatpush1.bf16.msra.mxu0 %v1852
        %2174 = vmatprep.subr.bf16.mxu0 %v1857
        %2175 = vmatpush1.bf16.msra.mxu0 %v1856
        %2176 = vmatprep.subr.bf16.mxu0 %v1861
        %2177 = vmatpush1.bf16.msra.mxu0 %v1860
        %2178 = vmatprep.subr.bf16.mxu0 %v1865
        %2179 = vmatpush1.bf16.msra.mxu0 %v1864
        %2180 = vmatprep.subr.bf16.mxu0 %v1869
        %2181 = vmatpush1.bf16.msra.mxu0 %v1868
        %2182 = vmatprep.subr.bf16.mxu0 %v1873
        %2183 = vmatpush1.bf16.msra.mxu0 %v1872
        %2184 = vmatprep.subr.bf16.mxu0 %v1877
        %2185 = vmatpush1.bf16.msra.mxu0 %v1876
        %2186 = vmatprep.subr.bf16.mxu0 %v1881
        %2187 = vmatpush1.bf16.msra.mxu0 %v1880
        %2188 = vmatprep.mubr.bf16.mxu0 %v1427
        %2189 = vmatmul.mubr.bf16.gmra.mrb[0].mxu0 %v1426
        %v2190 = vpop.f32.mrb[0].mxu0
        %v2191 = vadd.f32 %v1411, %v2190
        %v2192 = vpop.f32.mrb[0].mxu0
        %v2193 = vadd.f32 %v1415, %v2192
        %v2194 = vpop.f32.mrb[0].mxu0
        %v2195 = vpop.f32.mrb[0].mxu0
        %2196 = vdwg.mxu0
        %2197 = vmatprep.subr.bf16.mxu0 %v1885
        %2198 = vmatpush1.bf16.msra.mxu0 %v1884
        %2199 = vmatprep.subr.bf16.mxu0 %v1889
        %2200 = vmatpush1.bf16.msra.mxu0 %v1888
        %2201 = vmatprep.subr.bf16.mxu0 %v1893
        %2202 = vmatpush1.bf16.msra.mxu0 %v1892
        %2203 = vmatprep.subr.bf16.mxu0 %v1897
        %2204 = vmatpush1.bf16.msra.mxu0 %v1896
        %2205 = vmatprep.subr.bf16.mxu0 %v1901
        %2206 = vmatpush1.bf16.msra.mxu0 %v1900
        %2207 = vmatprep.subr.bf16.mxu0 %v1905
        %2208 = vmatpush1.bf16.msra.mxu0 %v1904
        %2209 = vmatprep.subr.bf16.mxu0 %v1909
        %2210 = vmatpush1.bf16.msra.mxu0 %v1908
        %2211 = vmatprep.subr.bf16.mxu0 %v1913
        %2212 = vmatpush1.bf16.msra.mxu0 %v1912
        %2213 = vmatprep.subr.bf16.mxu0 %v1917
        %2214 = vmatpush1.bf16.msra.mxu0 %v1916
        %2215 = vmatprep.subr.bf16.mxu0 %v1921
        %2216 = vmatpush1.bf16.msra.mxu0 %v1920
        %2217 = vmatprep.subr.bf16.mxu0 %v1925
        %2218 = vmatpush1.bf16.msra.mxu0 %v1924
        %2219 = vmatprep.subr.bf16.mxu0 %v1929
        %2220 = vmatpush1.bf16.msra.mxu0 %v1928
        %2221 = vmatprep.subr.bf16.mxu0 %v1933
        %2222 = vmatpush1.bf16.msra.mxu0 %v1932
        %2223 = vmatprep.subr.bf16.mxu0 %v1937
        %2224 = vmatpush1.bf16.msra.mxu0 %v1936
        %2225 = vmatprep.subr.bf16.mxu0 %v1941
        %2226 = vmatpush1.bf16.msra.mxu0 %v1940
        %2227 = vmatprep.subr.bf16.mxu0 %v1945
        %2228 = vmatpush1.bf16.msra.mxu0 %v1944
        %2229 = vmatprep.mubr.bf16.mxu0 %v1429
        %2230 = vmatmul.mubr.bf16.gmra.mrb[0].mxu0 %v1428
        %v2231 = vpop.f32.mrb[0].mxu0
        %v2232 = vadd.f32 %v2191, %v2231
        %v2233 = vpop.f32.mrb[0].mxu0
        %v2234 = vadd.f32 %v2193, %v2233
        %v2235 = vpop.f32.mrb[0].mxu0
        %v2236 = vpop.f32.mrb[0].mxu0
        %2237 = vdwg.mxu0
        %v2238 = vld [vmem:[#allocation3] sm:$0xff]
        %v2239 = vld [vmem:[#allocation3 + $0x8] sm:$0xff]
        %v2240 = vld [vmem:[#allocation3 + $0x10] sm:$0xff]
        %v2241 = vld [vmem:[#allocation3 + $0x18] sm:$0xff]
        %s2242 = scalar_select %p905, 1, 0
        %s2243 = scvt.s32.f32 %s2242
        %v2244 = vstv %s2243
        %v2245 = vmul.f32 %v2238, %v2244
        %v2246 = vmul.f32 %v2239, %v2244
        %v2247 = vmul.f32 %v2240, %v2244
        %v2248 = vmul.f32 %v2241, %v2244
        %v2249 = vadd.f32 %v2150, %v2245
        %v2250 = vadd.f32 %v2152, %v2246
        %v2251 = vadd.f32 %v2232, %v2247
        %v2252 = vadd.f32 %v2234, %v2248
        %v2253 = vmax.f32 %v2249, 0.0
        %v2254 = vmax.f32 %v2250, 0.0
        %v2255 = vmax.f32 %v2251, 0.0
        %v2256 = vmax.f32 %v2252, 0.0
        %v2257 = vpack.c.bf16 %v2253, %v2253
        %v2258 = vpack.c.bf16 %v2254, %v2254
        %v2259 = vpack.c.bf16 %v2255, %v2255
        %v2260 = vpack.c.bf16 %v2256, %v2256
        %v2265 = vunpack.c.l.b16 %v2257
        %v2266 = vunpack.c.l.b16 %v2258
        %v2267 = vunpack.c.l.b16 %v2259
        %v2268 = vunpack.c.l.b16 %v2260
        %v2269 = vpack.c.b16 %v2266, %v2265
        %v2270 = vpack.c.b16 %v2268, %v2267
        %2273 = vst [vmem:[#allocation2] sm:$0xff] %v2269
        %2274 = vst [vmem:[#allocation2 + $0x8] sm:$0xff] %v2270
        %p2275 = scmp.eq.s32.totalorder %s24, 7
        // Predicated region
        $region65: #{model_forward.1} parent=39 // pred_check
          %p2276 = pneg %p2275
        $region66: #{model_forward.1} parent=39 // pred_check_branch
          %2278 = sbr.rel (%p2276) target = $region68
        $region67: #{model_forward.1} parent=39 // pred_region
          %s2279 = scalar_lea.vmem [#allocation9], 256
          %v2280 = vld [vmem:[%s2279] sm:$0xf]
          %v2281 = vld [vmem:[%s2279 + $0x4] sm:$0xf]
          %v2282 = vld [vmem:[%s2279 + $0x8] sm:$0xf]
          %v2283 = vld [vmem:[%s2279 + $0xc] sm:$0xf]
          %v2284 = vld [vmem:[%s2279 + $0x10] sm:$0xf]
          %v2285 = vld [vmem:[%s2279 + $0x14] sm:$0xf]
          %v2286 = vld [vmem:[%s2279 + $0x18] sm:$0xf]
          %v2287 = vld [vmem:[%s2279 + $0x1c] sm:$0xf]
          %v2288 = vld [vmem:[%s2279 + $0x20] sm:$0xf]
          %v2289 = vld [vmem:[%s2279 + $0x24] sm:$0xf]
          %v2290 = vld [vmem:[%s2279 + $0x28] sm:$0xf]
          %v2291 = vld [vmem:[%s2279 + $0x2c] sm:$0xf]
          %v2292 = vld [vmem:[%s2279 + $0x30] sm:$0xf]
          %v2293 = vld [vmem:[%s2279 + $0x34] sm:$0xf]
          %v2294 = vld [vmem:[%s2279 + $0x38] sm:$0xf]
          %v2295 = vld [vmem:[%s2279 + $0x3c] sm:$0xf]
          %v2296 = vld [vmem:[%s2279 + $0x40] sm:$0xf]
          %v2297 = vld [vmem:[%s2279 + $0x44] sm:$0xf]
          %v2298 = vld [vmem:[%s2279 + $0x48] sm:$0xf]
          %v2299 = vld [vmem:[%s2279 + $0x4c] sm:$0xf]
          %v2300 = vld [vmem:[%s2279 + $0x50] sm:$0xf]
          %v2301 = vld [vmem:[%s2279 + $0x54] sm:$0xf]
          %v2302 = vld [vmem:[%s2279 + $0x58] sm:$0xf]
          %v2303 = vld [vmem:[%s2279 + $0x5c] sm:$0xf]
          %v2304 = vld [vmem:[%s2279 + $0x60] sm:$0xf]
          %v2305 = vld [vmem:[%s2279 + $0x64] sm:$0xf]
          %v2306 = vld [vmem:[%s2279 + $0x68] sm:$0xf]
          %v2307 = vld [vmem:[%s2279 + $0x6c] sm:$0xf]
          %v2308 = vld [vmem:[%s2279 + $0x70] sm:$0xf]
          %v2309 = vld [vmem:[%s2279 + $0x74] sm:$0xf]
          %v2310 = vld [vmem:[%s2279 + $0x78] sm:$0xf]
          %v2311 = vld [vmem:[%s2279 + $0x7c] sm:$0xf]
          %v2312 = vld [vmem:[%s2279 + $0x80] sm:$0xf]
          %v2313 = vld [vmem:[%s2279 + $0x84] sm:$0xf]
          %v2314 = vld [vmem:[%s2279 + $0x88] sm:$0xf]
          %v2315 = vld [vmem:[%s2279 + $0x8c] sm:$0xf]
          %v2316 = vld [vmem:[%s2279 + $0x90] sm:$0xf]
          %v2317 = vld [vmem:[%s2279 + $0x94] sm:$0xf]
          %v2318 = vld [vmem:[%s2279 + $0x98] sm:$0xf]
          %v2319 = vld [vmem:[%s2279 + $0x9c] sm:$0xf]
          %v2320 = vld [vmem:[%s2279 + $0xa0] sm:$0xf]
          %v2321 = vld [vmem:[%s2279 + $0xa4] sm:$0xf]
          %v2322 = vld [vmem:[%s2279 + $0xa8] sm:$0xf]
          %v2323 = vld [vmem:[%s2279 + $0xac] sm:$0xf]
          %v2324 = vld [vmem:[%s2279 + $0xb0] sm:$0xf]
          %v2325 = vld [vmem:[%s2279 + $0xb4] sm:$0xf]
          %v2326 = vld [vmem:[%s2279 + $0xb8] sm:$0xf]
          %v2327 = vld [vmem:[%s2279 + $0xbc] sm:$0xf]
          %v2328 = vld [vmem:[%s2279 + $0xc0] sm:$0xf]
          %v2329 = vld [vmem:[%s2279 + $0xc4] sm:$0xf]
          %v2330 = vld [vmem:[%s2279 + $0xc8] sm:$0xf]
          %v2331 = vld [vmem:[%s2279 + $0xcc] sm:$0xf]
          %v2332 = vld [vmem:[%s2279 + $0xd0] sm:$0xf]
          %v2333 = vld [vmem:[%s2279 + $0xd4] sm:$0xf]
          %v2334 = vld [vmem:[%s2279 + $0xd8] sm:$0xf]
          %v2335 = vld [vmem:[%s2279 + $0xdc] sm:$0xf]
          %v2336 = vld [vmem:[%s2279 + $0xe0] sm:$0xf]
          %v2337 = vld [vmem:[%s2279 + $0xe4] sm:$0xf]
          %v2338 = vld [vmem:[%s2279 + $0xe8] sm:$0xf]
          %v2339 = vld [vmem:[%s2279 + $0xec] sm:$0xf]
          %v2340 = vld [vmem:[%s2279 + $0xf0] sm:$0xf]
          %v2341 = vld [vmem:[%s2279 + $0xf4] sm:$0xf]
          %v2342 = vld [vmem:[%s2279 + $0xf8] sm:$0xf]
          %v2343 = vld [vmem:[%s2279 + $0xfc] sm:$0xf]
          %v2344 = vld [vmem:[#allocation10 + $0x22] ss:$0 sm:$0xff]
          %v2409 = vunpack.c.l.b16 %v2280
          %v2410 = vunpack.c.l.b16 %v2281
          %v2411 = vunpack.c.l.b16 %v2282
          %v2412 = vunpack.c.l.b16 %v2283
          %v2413 = vunpack.c.l.b16 %v2284
          %v2414 = vunpack.c.l.b16 %v2285
          %v2415 = vunpack.c.l.b16 %v2286
          %v2416 = vunpack.c.l.b16 %v2287
          %v2417 = vunpack.c.l.b16 %v2288
          %v2418 = vunpack.c.l.b16 %v2289
          %v2419 = vunpack.c.l.b16 %v2290
          %v2420 = vunpack.c.l.b16 %v2291
          %v2421 = vunpack.c.l.b16 %v2292
          %v2422 = vunpack.c.l.b16 %v2293
          %v2423 = vunpack.c.l.b16 %v2294
          %v2424 = vunpack.c.l.b16 %v2295
          %v2425 = vunpack.c.l.b16 %v2296
          %v2426 = vunpack.c.l.b16 %v2297
          %v2427 = vunpack.c.l.b16 %v2298
          %v2428 = vunpack.c.l.b16 %v2299
          %v2429 = vunpack.c.l.b16 %v2300
          %v2430 = vunpack.c.l.b16 %v2301
          %v2431 = vunpack.c.l.b16 %v2302
          %v2432 = vunpack.c.l.b16 %v2303
          %v2433 = vunpack.c.l.b16 %v2304
          %v2434 = vunpack.c.l.b16 %v2305
          %v2435 = vunpack.c.l.b16 %v2306
          %v2436 = vunpack.c.l.b16 %v2307
          %v2437 = vunpack.c.l.b16 %v2308
          %v2438 = vunpack.c.l.b16 %v2309
          %v2439 = vunpack.c.l.b16 %v2310
          %v2440 = vunpack.c.l.b16 %v2311
          %v2441 = vunpack.c.l.b16 %v2312
          %v2442 = vunpack.c.l.b16 %v2313
          %v2443 = vunpack.c.l.b16 %v2314
          %v2444 = vunpack.c.l.b16 %v2315
          %v2445 = vunpack.c.l.b16 %v2316
          %v2446 = vunpack.c.l.b16 %v2317
          %v2447 = vunpack.c.l.b16 %v2318
          %v2448 = vunpack.c.l.b16 %v2319
          %v2449 = vunpack.c.l.b16 %v2320
          %v2450 = vunpack.c.l.b16 %v2321
          %v2451 = vunpack.c.l.b16 %v2322
          %v2452 = vunpack.c.l.b16 %v2323
          %v2453 = vunpack.c.l.b16 %v2324
          %v2454 = vunpack.c.l.b16 %v2325
          %v2455 = vunpack.c.l.b16 %v2326
          %v2456 = vunpack.c.l.b16 %v2327
          %v2457 = vunpack.c.l.b16 %v2328
          %v2458 = vunpack.c.l.b16 %v2329
          %v2459 = vunpack.c.l.b16 %v2330
          %v2460 = vunpack.c.l.b16 %v2331
          %v2461 = vunpack.c.l.b16 %v2332
          %v2462 = vunpack.c.l.b16 %v2333
          %v2463 = vunpack.c.l.b16 %v2334
          %v2464 = vunpack.c.l.b16 %v2335
          %v2465 = vunpack.c.l.b16 %v2336
          %v2466 = vunpack.c.l.b16 %v2337
          %v2467 = vunpack.c.l.b16 %v2338
          %v2468 = vunpack.c.l.b16 %v2339
          %v2469 = vunpack.c.l.b16 %v2340
          %v2470 = vunpack.c.l.b16 %v2341
          %v2471 = vunpack.c.l.b16 %v2342
          %v2472 = vunpack.c.l.b16 %v2343
          %v2473 = vpack.c.b16 %v2410, %v2409
          %v2474 = vpack.c.b16 %v2412, %v2411
          %v2475 = vpack.c.b16 %v2414, %v2413
          %v2476 = vpack.c.b16 %v2416, %v2415
          %v2477 = vpack.c.b16 %v2418, %v2417
          %v2478 = vpack.c.b16 %v2420, %v2419
          %v2479 = vpack.c.b16 %v2422, %v2421
          %v2480 = vpack.c.b16 %v2424, %v2423
          %v2481 = vpack.c.b16 %v2426, %v2425
          %v2482 = vpack.c.b16 %v2428, %v2427
          %v2483 = vpack.c.b16 %v2430, %v2429
          %v2484 = vpack.c.b16 %v2432, %v2431
          %v2485 = vpack.c.b16 %v2434, %v2433
          %v2486 = vpack.c.b16 %v2436, %v2435
          %v2487 = vpack.c.b16 %v2438, %v2437
          %v2488 = vpack.c.b16 %v2440, %v2439
          %v2489 = vpack.c.b16 %v2442, %v2441
          %v2490 = vpack.c.b16 %v2444, %v2443
          %v2491 = vpack.c.b16 %v2446, %v2445
          %v2492 = vpack.c.b16 %v2448, %v2447
          %v2493 = vpack.c.b16 %v2450, %v2449
          %v2494 = vpack.c.b16 %v2452, %v2451
          %v2495 = vpack.c.b16 %v2454, %v2453
          %v2496 = vpack.c.b16 %v2456, %v2455
          %v2497 = vpack.c.b16 %v2458, %v2457
          %v2498 = vpack.c.b16 %v2460, %v2459
          %v2499 = vpack.c.b16 %v2462, %v2461
          %v2500 = vpack.c.b16 %v2464, %v2463
          %v2501 = vpack.c.b16 %v2466, %v2465
          %v2502 = vpack.c.b16 %v2468, %v2467
          %v2503 = vpack.c.b16 %v2470, %v2469
          %v2504 = vpack.c.b16 %v2472, %v2471
          %2537 = vmatprep.subr.bf16.mxu0 0
          %2538 = vmatpush1.bf16.msra.mxu0 %v2473
          %2539 = vmatprep.subr.bf16.mxu0 0
          %2540 = vmatpush1.bf16.msra.mxu0 %v2474
          %2541 = vmatprep.subr.bf16.mxu0 0
          %2542 = vmatpush1.bf16.msra.mxu0 %v2475
          %2543 = vmatprep.subr.bf16.mxu0 0
          %2544 = vmatpush1.bf16.msra.mxu0 %v2476
          %2545 = vmatprep.subr.bf16.mxu0 0
          %2546 = vmatpush1.bf16.msra.mxu0 %v2477
          %2547 = vmatprep.subr.bf16.mxu0 0
          %2548 = vmatpush1.bf16.msra.mxu0 %v2478
          %2549 = vmatprep.subr.bf16.mxu0 0
          %2550 = vmatpush1.bf16.msra.mxu0 %v2479
          %2551 = vmatprep.subr.bf16.mxu0 0
          %2552 = vmatpush1.bf16.msra.mxu0 %v2480
          %2553 = vmatprep.subr.bf16.mxu0 0
          %2554 = vmatpush1.bf16.msra.mxu0 %v2481
          %2555 = vmatprep.subr.bf16.mxu0 0
          %2556 = vmatpush1.bf16.msra.mxu0 %v2482
          %2557 = vmatprep.subr.bf16.mxu0 0
          %2558 = vmatpush1.bf16.msra.mxu0 %v2483
          %2559 = vmatprep.subr.bf16.mxu0 0
          %2560 = vmatpush1.bf16.msra.mxu0 %v2484
          %2561 = vmatprep.subr.bf16.mxu0 0
          %2562 = vmatpush1.bf16.msra.mxu0 %v2485
          %2563 = vmatprep.subr.bf16.mxu0 0
          %2564 = vmatpush1.bf16.msra.mxu0 %v2486
          %2565 = vmatprep.subr.bf16.mxu0 0
          %2566 = vmatpush1.bf16.msra.mxu0 %v2487
          %2567 = vmatprep.subr.bf16.mxu0 0
          %2568 = vmatpush1.bf16.msra.mxu0 %v2488
          %2569 = vmatprep.mubr.bf16.mxu0 %v2258
          %2570 = vmatmul.mubr.bf16.gmra.mrb[0].mxu0 %v2257
          %v2571 = vpop.f32.mrb[0].mxu0
          %v2572 = vadd.f32 %v2344, %v2571
          %v2573 = vpop.f32.mrb[0].mxu0
          %v2574 = vpop.f32.mrb[0].mxu0
          %v2575 = vpop.f32.mrb[0].mxu0
          %2576 = vdwg.mxu0
          %2577 = vmatprep.subr.bf16.mxu0 0
          %2578 = vmatpush1.bf16.msra.mxu0 %v2489
          %2579 = vmatprep.subr.bf16.mxu0 0
          %2580 = vmatpush1.bf16.msra.mxu0 %v2490
          %2581 = vmatprep.subr.bf16.mxu0 0
          %2582 = vmatpush1.bf16.msra.mxu0 %v2491
          %2583 = vmatprep.subr.bf16.mxu0 0
          %2584 = vmatpush1.bf16.msra.mxu0 %v2492
          %2585 = vmatprep.subr.bf16.mxu0 0
          %2586 = vmatpush1.bf16.msra.mxu0 %v2493
          %2587 = vmatprep.subr.bf16.mxu0 0
          %2588 = vmatpush1.bf16.msra.mxu0 %v2494
          %2589 = vmatprep.subr.bf16.mxu0 0
          %2590 = vmatpush1.bf16.msra.mxu0 %v2495
          %2591 = vmatprep.subr.bf16.mxu0 0
          %2592 = vmatpush1.bf16.msra.mxu0 %v2496
          %2593 = vmatprep.subr.bf16.mxu0 0
          %2594 = vmatpush1.bf16.msra.mxu0 %v2497
          %2595 = vmatprep.subr.bf16.mxu0 0
          %2596 = vmatpush1.bf16.msra.mxu0 %v2498
          %2597 = vmatprep.subr.bf16.mxu0 0
          %2598 = vmatpush1.bf16.msra.mxu0 %v2499
          %2599 = vmatprep.subr.bf16.mxu0 0
          %2600 = vmatpush1.bf16.msra.mxu0 %v2500
          %2601 = vmatprep.subr.bf16.mxu0 0
          %2602 = vmatpush1.bf16.msra.mxu0 %v2501
          %2603 = vmatprep.subr.bf16.mxu0 0
          %2604 = vmatpush1.bf16.msra.mxu0 %v2502
          %2605 = vmatprep.subr.bf16.mxu0 0
          %2606 = vmatpush1.bf16.msra.mxu0 %v2503
          %2607 = vmatprep.subr.bf16.mxu0 0
          %2608 = vmatpush1.bf16.msra.mxu0 %v2504
          %2609 = vmatprep.mubr.bf16.mxu0 %v2260
          %2610 = vmatmul.mubr.bf16.gmra.mrb[0].mxu0 %v2259
          %v2611 = vpop.f32.mrb[0].mxu0
          %v2612 = vadd.f32 %v2572, %v2611
          %v2613 = vpop.f32.mrb[0].mxu0
          %v2614 = vpop.f32.mrb[0].mxu0
          %v2615 = vpop.f32.mrb[0].mxu0
          %2616 = vdwg.mxu0
          %2617 = vst [vmem:[%s6] sm:$0xff] %v2612
        $region68: #{model_forward.1} parent=39 // pred_fallthru
          _
        // Predicated region
        $region69: #{model_forward.1} parent=39 // pred_check
          %p2618 = pneg %p147
        $region70: #{model_forward.1} parent=39 // pred_check_branch
          %2620 = sbr.rel (%p2618) target = $region72
        $region71: #{model_forward.1} parent=39 // pred_region
          %s2622 = ssub.s32 128, 128
          %2623 = vsyncadd [#allocation6], %s2622
          %s2625 = sshll.u32 [#allocation12], 4
          %s2626 = int_to_ptr.vmem [resolvable:$true] %s2625
          %2628 = dma.vmem_to_hbm [thread:$0]  %s2626, 128, %s5, [#allocation6]
        $region72: #{model_forward.1} parent=39 // pred_fallthru
          _
        // Predicated region
        $region73: #{model_forward.1} parent=39 // pred_check
          %p2629 = pneg %p168
        $region74: #{model_forward.1} parent=39 // pred_check_branch
          %2631 = sbr.rel (%p2629) target = $region76
        $region75: #{model_forward.1} parent=39 // pred_region
          _
        $region76: #{model_forward.1} parent=39 // pred_fallthru
          _
        // Predicated region
        $region77: #{model_forward.1} parent=39 // pred_check
          %p2632 = pneg %p147
        $region78: #{model_forward.1} parent=39 // pred_check_branch
          %2634 = sbr.rel (%p2632) target = $region80
        $region79: #{model_forward.1} parent=39 // pred_region
          %2635 = dma.done [#allocation6], 128
        $region80: #{model_forward.1} parent=39 // pred_fallthru
          _
        // Predicated region
        $region81: #{model_forward.1} parent=39 // pred_check
          %p2636 = pneg %p168
        $region82: #{model_forward.1} parent=39 // pred_check_branch
          %2638 = sbr.rel (%p2636) target = $region84
        $region83: #{model_forward.1} parent=39 // pred_region
          _
        $region84: #{model_forward.1} parent=39 // pred_fallthru
          _
      $region40: #{model_forward.1} parent=5 // pred_fallthru
        _
      %p2639 = scmp.le.s32.totalorder 2, %s19
      // Predicated region
      $region85: #{model_forward.1} parent=5 // pred_check
        %p2640 = pneg %p2639
      $region86: #{model_forward.1} parent=5 // pred_check_branch
        %2642 = sbr.rel (%p2640) target = $region88
      $region87: #{model_forward.1} parent=5 // pred_region
        %s2643 = ssub.s32 %s19, 2
      $region88: #{model_forward.1} parent=5 // pred_fallthru
        _
    $region6: #{model_forward.1} parent=1 // loop_footer
      %s23 = sadd.s32 1, %s19
    $region7: #{model_forward.1} parent=1 // loop_footer_branch
      %18 = sbr.rel target = $region3
    $region8: #{model_forward.1} parent=1 // loop_exit
      _
    %2644 = vsyncpa [#allocation5], 1
    %s2645 = scalar_lea.sflag [#allocation5], 1
    %2646 = vsyncpa %s2645, 1
    %2647 = vsyncpa [#allocation8], 1
    %s2648 = scalar_lea.sflag [#allocation8], 1
    %2649 = vsyncpa %s2648, 1
    %2650 = vsyncpa [#allocation11], 1
    %2651 = vsyncpa [#allocation6], 1
    %s2652 = scalar_lea.sflag [#allocation6], 1
    %2653 = vsyncpa %s2652, 1

</llo_original>
